<compile_context>
chip_gen: v7x
topology: tpu7x:2x2x1
jax: 0.10.0
libtpu: 0.0.40
codegen_flags: <defaults>
</compile_context>

<pallas_src>
import jax
import jax.numpy as jnp
from jax.experimental import pallas as pl
from jax.experimental.pallas import tpu as pltpu


def _bilinear_matrix_align_corners(out_size, in_size):
    """(out_size, in_size) interpolation matrix M so that `up = M @ x` matches
    F.upsample(..., mode='bilinear', align_corners=True) along one axis."""
    if in_size == 1:
        return jnp.ones((out_size, 1), jnp.float32)
    if out_size == 1:
        coords = jnp.zeros((1,), jnp.float32)
    else:
        coords = jnp.arange(out_size, dtype=jnp.float32) * ((in_size - 1) / (out_size - 1))
    i0 = jnp.clip(jnp.floor(coords).astype(jnp.int32), 0, in_size - 2)
    frac = coords - i0.astype(jnp.float32)
    rows = jnp.arange(out_size)
    m = jnp.zeros((out_size, in_size), jnp.float32)
    m = m.at[rows, i0].add(1.0 - frac)
    m = m.at[rows, i0 + 1].add(frac)
    return m


def _masked_l2_kernel(wh1_ref, wwt1_ref, wh2_ref, wwt2_ref, wh3_ref, wwt3_ref,
                      p1_ref, p2_ref, p3_ref, t_ref,
                      s1_ref, s2_ref, s3_ref, cnt_ref):
    # Accumulators stay resident across the whole grid; init on the first step.
    @pl.when(pl.program_id(0) == 0)
    def _():
        s1_ref[...] = jnp.zeros_like(s1_ref)
        s2_ref[...] = jnp.zeros_like(s2_ref)
        s3_ref[...] = jnp.zeros_like(s3_ref)
        cnt_ref[...] = jnp.zeros_like(cnt_ref)

    tgt = t_ref[0].astype(jnp.float32)                    # (H, W)
    # mask = target.clone(); mask[target > 0] = 1.0
    mask = jnp.where(tgt > 0, jnp.float32(1.0), tgt)      # (H, W)

    def masked_sq_sum(wh_ref, wwt_ref, p_ref):
        # Separable align_corners=True bilinear upsample as two MXU matmuls.
        pred = p_ref[0].astype(jnp.float32)               # (Hin, Win)
        up_rows = jnp.dot(wh_ref[...], pred,
                          preferred_element_type=jnp.float32)   # (H, Win)
        up = jnp.dot(up_rows, wwt_ref[...],
                     preferred_element_type=jnp.float32)        # (H, W)
        d = up - tgt
        return jnp.sum(d * d * mask)

    s1_ref[...] += masked_sq_sum(wh1_ref, wwt1_ref, p1_ref)
    s2_ref[...] += masked_sq_sum(wh2_ref, wwt2_ref, p2_ref)
    s3_ref[...] += masked_sq_sum(wh3_ref, wwt3_ref, p3_ref)
    cnt_ref[...] += jnp.sum((mask > 0).astype(jnp.float32))


def criterion_masked_l2(pred1, pred2, pred3, target, aux_weight=0.4):
    n, c, h, w = target.shape
    b = n * c
    t3 = target.reshape(b, h, w)

    preds3d = []
    mats = []
    for p in (pred1, pred2, pred3):
        pn, pc, hin, win = p.shape
        assert pn == n and pc == c, "pred/target batch/channel mismatch"
        preds3d.append(p.reshape(b, hin, win))
        wh = _bilinear_matrix_align_corners(h, hin)            # (h, hin)
        wwt = _bilinear_matrix_align_corners(w, win).T         # (win, w)
        mats.append((wh, wwt))

    (wh1, wwt1), (wh2, wwt2), (wh3, wwt3) = mats
    p1, p2, p3 = preds3d

    def const_spec(arr):            # small interp matrices: same block every step
        return pl.BlockSpec(arr.shape, lambda i: (0, 0))

    def per_slab_spec(arr3):        # one (1, H*, W*) image slab per grid step
        return pl.BlockSpec((1,) + arr3.shape[1:], lambda i: (i, 0, 0))

    in_specs = [
        const_spec(wh1), const_spec(wwt1),
        const_spec(wh2), const_spec(wwt2),
        const_spec(wh3), const_spec(wwt3),
        per_slab_spec(p1), per_slab_spec(p2), per_slab_spec(p3),
        per_slab_spec(t3),
    ]
    scalar_spec = pl.BlockSpec((1, 1), lambda i: (0, 0))
    out_specs = (scalar_spec, scalar_spec, scalar_spec, scalar_spec)
    out_shape = tuple(jax.ShapeDtypeStruct((1, 1), jnp.float32) for _ in range(4))

    s1, s2, s3, cnt = pl.pallas_call(
        _masked_l2_kernel,
        grid=(b,),
        in_specs=in_specs,
        out_specs=out_specs,
        out_shape=out_shape,
        compiler_params=pltpu.CompilerParams(
            dimension_semantics=("arbitrary",)),   # reduction axis (accumulators)
    )(wh1, wwt1, wh2, wwt2, wh3, wwt3, p1, p2, p3, t3)

    # Finalize exactly like the PyTorch module (same count for all three losses).
    denom = 2.0 * cnt[0, 0]
    loss1 = s1[0, 0] / denom
    loss2 = s2[0, 0] / denom
    loss3 = s3[0, 0] / denom
    return loss1 + aux_weight * loss2 + aux_weight * loss3


class CriterionMaskedL2Pallas:
    """Mirror of the PyTorch `CriterionMaskedL2` module (forward pass)."""

    def __init__(self, aux_weight=0.4):
        self.aux_weight = aux_weight

    def __call__(self, pred1, pred2, pred3, target):
        return criterion_masked_l2(pred1, pred2, pred3, target, self.aux_weight)


# ---------------- plain-JAX reference (gather-based bilinear) ----------------

def _ref_upsample_bilinear_ac(x, out_h, out_w):
    n, c, in_h, in_w = x.shape

    def axis(out_size, in_size):
        if out_size == 1 or in_size == 1:
            coords = jnp.zeros((out_size,), jnp.float32)
        else:
            coords = jnp.arange(out_size, dtype=jnp.float32) * ((in_size - 1) / (out_size - 1))
        i0 = jnp.clip(jnp.floor(coords).astype(jnp.int32), 0, max(in_size - 2, 0))
        frac = coords - i0.astype(jnp.float32)
        i1 = jnp.minimum(i0 + 1, in_size - 1)
        return i0, i1, frac

    r0, r1, rf = axis(out_h, in_h)
    c0, c1, cf = axis(out_w, in_w)
    rows = (x[:, :, r0, :] * (1.0 - rf)[None, None, :, None]
            + x[:, :, r1, :] * rf[None, None, :, None])
    out = (rows[:, :, :, c0] * (1.0 - cf)[None, None, None, :]
           + rows[:, :, :, c1] * cf[None, None, None, :])
    return out


def _ref_criterion_masked_l2(pred1, pred2, pred3, target, aux_weight=0.4):
    h, w = target.shape[2], target.shape[3]
    mask = jnp.where(target > 0, jnp.float32(1.0), target)
    cnt = jnp.sum((mask > 0).astype(jnp.float32))

    def masked_l2(pred):
        up = _ref_upsample_bilinear_ac(pred, h, w)
        return jnp.sum((up - target) ** 2 * mask) / (2.0 * cnt)

    return masked_l2(pred1) + aux_weight * masked_l2(pred2) + aux_weight * masked_l2(pred3)


if __name__ == "__main__":
    key = jax.random.PRNGKey(0)
    k1, k2, k3, k4, k5 = jax.random.split(key, 5)

    # Depth-style inputs: batch=2, 1 channel, 16x16 target; aux heads at 8x8.
    N, C, H, W = 2, 1, 16, 16
    depth = jax.random.uniform(k4, (N, C, H, W), minval=0.5, maxval=5.0, dtype=jnp.float32)
    missing = jax.random.uniform(k5, (N, C, H, W)) < 0.3          # ~30% pixels without GT
    target = jnp.where(missing, 0.0, depth).astype(jnp.float32)

    pred1 = (jax.random.normal(k1, (N, C, 16, 16)) + 2.0).astype(jnp.float32)
    pred2 = (jax.random.normal(k2, (N, C, 8, 8)) + 2.0).astype(jnp.float32)
    pred3 = (jax.random.normal(k3, (N, C, 8, 8)) + 2.0).astype(jnp.float32)

    mod = CriterionMaskedL2Pallas(aux_weight=0.4)
    loss = jax.block_until_ready(mod(pred1, pred2, pred3, target))

    ref = _ref_criterion_masked_l2(pred1, pred2, pred3, target, aux_weight=0.4)
    assert loss.shape == (), loss.shape
    assert jnp.allclose(loss, ref, rtol=5e-3, atol=5e-3), (float(loss), float(ref))

    print("KERNEL_OK")
</pallas_src>

<mosaic_0001>
module attributes {stable_mosaic.version = 11 : i64} {
  func.func @_masked_l2_kernel(%arg0: i32, %arg1: memref<16x16xf32, #tpu.memory_space<vmem>>, %arg2: memref<16x16xf32, #tpu.memory_space<vmem>>, %arg3: memref<16x8xf32, #tpu.memory_space<vmem>>, %arg4: memref<8x16xf32, #tpu.memory_space<vmem>>, %arg5: memref<16x8xf32, #tpu.memory_space<vmem>>, %arg6: memref<8x16xf32, #tpu.memory_space<vmem>>, %arg7: memref<1x16x16xf32, #tpu.memory_space<vmem>>, %arg8: memref<1x8x8xf32, #tpu.memory_space<vmem>>, %arg9: memref<1x8x8xf32, #tpu.memory_space<vmem>>, %arg10: memref<1x16x16xf32, #tpu.memory_space<vmem>>, %arg11: memref<1x1xf32, #tpu.memory_space<vmem>>, %arg12: memref<1x1xf32, #tpu.memory_space<vmem>>, %arg13: memref<1x1xf32, #tpu.memory_space<vmem>>, %arg14: memref<1x1xf32, #tpu.memory_space<vmem>>) attributes {dimension_semantics = [#tpu.dimension_semantics<arbitrary>], iteration_bounds = array<i64: 2>, scalar_prefetch = 0 : i64, scratch_operands = 0 : i64, tpu.core_type = #tpu.core_type<tc>, window_params = [{pipeline_mode = #tpu.pipeline_mode<synchronous>, transform_indices = @transform_0, window_bounds = array<i64: 16, 16>}, {pipeline_mode = #tpu.pipeline_mode<synchronous>, transform_indices = @transform_1, window_bounds = array<i64: 16, 16>}, {pipeline_mode = #tpu.pipeline_mode<synchronous>, transform_indices = @transform_2, window_bounds = array<i64: 16, 8>}, {pipeline_mode = #tpu.pipeline_mode<synchronous>, transform_indices = @transform_3, window_bounds = array<i64: 8, 16>}, {pipeline_mode = #tpu.pipeline_mode<synchronous>, transform_indices = @transform_4, window_bounds = array<i64: 16, 8>}, {pipeline_mode = #tpu.pipeline_mode<synchronous>, transform_indices = @transform_5, window_bounds = array<i64: 8, 16>}, {transform_indices = @transform_6, window_bounds = array<i64: 1, 16, 16>}, {transform_indices = @transform_7, window_bounds = array<i64: 1, 8, 8>}, {transform_indices = @transform_8, window_bounds = array<i64: 1, 8, 8>}, {transform_indices = @transform_9, window_bounds = array<i64: 1, 16, 16>}, {pipeline_mode = #tpu.pipeline_mode<synchronous>, transform_indices = @transform_10, window_bounds = array<i64: 1, 1>}, {pipeline_mode = #tpu.pipeline_mode<synchronous>, transform_indices = @transform_11, window_bounds = array<i64: 1, 1>}, {pipeline_mode = #tpu.pipeline_mode<synchronous>, transform_indices = @transform_12, window_bounds = array<i64: 1, 1>}, {pipeline_mode = #tpu.pipeline_mode<synchronous>, transform_indices = @transform_13, window_bounds = array<i64: 1, 1>}]} {
    %c0_i32 = arith.constant 0 : i32
    %0 = arith.cmpi eq, %arg0, %c0_i32 : i32
    %1 = arith.extui %0 : i1 to i32
    %c0_i32_0 = arith.constant 0 : i32
    %2 = arith.cmpi ne, %1, %c0_i32_0 : i32
    scf.if %2 {
      %cst_52 = arith.constant 0.000000e+00 : f32
      %72 = vector.broadcast %cst_52 : f32 to vector<1x1xf32>
      %c0_53 = arith.constant 0 : index
      %c0_54 = arith.constant 0 : index
      %73 = vector.load %arg11[%c0_53, %c0_54] : memref<1x1xf32, #tpu.memory_space<vmem>>, vector<1x1xf32>
      tpu.vector_store %arg11[%c0_53, %c0_54], %72 {strides = array<i32>} : memref<1x1xf32, #tpu.memory_space<vmem>>, vector<1x1xf32>,
      %cst_55 = arith.constant 0.000000e+00 : f32
      %74 = vector.broadcast %cst_55 : f32 to vector<1x1xf32>
      %c0_56 = arith.constant 0 : index
      %c0_57 = arith.constant 0 : index
      %75 = vector.load %arg12[%c0_56, %c0_57] : memref<1x1xf32, #tpu.memory_space<vmem>>, vector<1x1xf32>
      tpu.vector_store %arg12[%c0_56, %c0_57], %74 {strides = array<i32>} : memref<1x1xf32, #tpu.memory_space<vmem>>, vector<1x1xf32>,
      %cst_58 = arith.constant 0.000000e+00 : f32
      %76 = vector.broadcast %cst_58 : f32 to vector<1x1xf32>
      %c0_59 = arith.constant 0 : index
      %c0_60 = arith.constant 0 : index
      %77 = vector.load %arg13[%c0_59, %c0_60] : memref<1x1xf32, #tpu.memory_space<vmem>>, vector<1x1xf32>
      tpu.vector_store %arg13[%c0_59, %c0_60], %76 {strides = array<i32>} : memref<1x1xf32, #tpu.memory_space<vmem>>, vector<1x1xf32>,
      %cst_61 = arith.constant 0.000000e+00 : f32
      %78 = vector.broadcast %cst_61 : f32 to vector<1x1xf32>
      %c0_62 = arith.constant 0 : index
      %c0_63 = arith.constant 0 : index
      %79 = vector.load %arg14[%c0_62, %c0_63] : memref<1x1xf32, #tpu.memory_space<vmem>>, vector<1x1xf32>
      tpu.vector_store %arg14[%c0_62, %c0_63], %78 {strides = array<i32>} : memref<1x1xf32, #tpu.memory_space<vmem>>, vector<1x1xf32>,
    } else {
    }
    %c0 = arith.constant 0 : index
    %c0_1 = arith.constant 0 : index
    %c0_2 = arith.constant 0 : index
    %3 = vector.load %arg10[%c0, %c0_1, %c0_2] : memref<1x16x16xf32, #tpu.memory_space<vmem>>, vector<1x16x16xf32>
    %4 = vector.shape_cast %3 : vector<1x16x16xf32> to vector<16x16xf32>
    %cst = arith.constant 0.000000e+00 : f32
    %5 = vector.broadcast %cst : f32 to vector<16x16xf32>
    %6 = arith.cmpf ogt, %4, %5 : vector<16x16xf32>
    %cst_3 = arith.constant 1.000000e+00 : f32
    %7 = vector.broadcast %cst_3 : f32 to vector<16x16xf32>
    %8 = arith.select %6, %7, %4 : vector<16x16xi1>, vector<16x16xf32>
    %c0_4 = arith.constant 0 : index
    %c0_5 = arith.constant 0 : index
    %9 = vector.load %arg11[%c0_4, %c0_5] : memref<1x1xf32, #tpu.memory_space<vmem>>, vector<1x1xf32>
    %c0_6 = arith.constant 0 : index
    %c0_7 = arith.constant 0 : index
    %c0_8 = arith.constant 0 : index
    %10 = vector.load %arg7[%c0_6, %c0_7, %c0_8] : memref<1x16x16xf32, #tpu.memory_space<vmem>>, vector<1x16x16xf32>
    %11 = vector.shape_cast %10 : vector<1x16x16xf32> to vector<16x16xf32>
    %c0_9 = arith.constant 0 : index
    %c0_10 = arith.constant 0 : index
    %12 = vector.load %arg1[%c0_9, %c0_10] : memref<16x16xf32, #tpu.memory_space<vmem>>, vector<16x16xf32>
    %cst_11 = arith.constant dense<0.000000e+00> : vector<16x16xf32>
    %13 = tpu.matmul %12, %11, %cst_11 {dimension_numbers = #tpu.dot_dimension_numbers<[1], [0], [0], [1], [0, 0, 1, 1], [], []>} : vector<16x16xf32>, vector<16x16xf32>, vector<16x16xf32> -> vector<16x16xf32>
    %c0_12 = arith.constant 0 : index
    %c0_13 = arith.constant 0 : index
    %14 = vector.load %arg2[%c0_12, %c0_13] : memref<16x16xf32, #tpu.memory_space<vmem>>, vector<16x16xf32>
    %cst_14 = arith.constant dense<0.000000e+00> : vector<16x16xf32>
    %15 = tpu.matmul %13, %14, %cst_14 {dimension_numbers = #tpu.dot_dimension_numbers<[1], [0], [0], [1], [0, 0, 1, 1], [], []>} : vector<16x16xf32>, vector<16x16xf32>, vector<16x16xf32> -> vector<16x16xf32>
    %16 = arith.subf %15, %4 : vector<16x16xf32>
    %17 = arith.mulf %16, %16 : vector<16x16xf32>
    %18 = arith.mulf %17, %8 : vector<16x16xf32>
    %19 = vector.shape_cast %18 : vector<16x16xf32> to vector<1x16x16xf32>
    %cst_15 = arith.constant dense<0.000000e+00> : vector<1xf32>
    %20 = vector.multi_reduction <add>, %19, %cst_15 [1, 2] : vector<1x16x16xf32> to vector<1xf32>
    %21 = vector.shape_cast %20 : vector<1xf32> to vector<1x1x1xf32>
    %22 = vector.extract %21[0, 0, 0] : f32 from vector<1x1x1xf32>
    %23 = vector.broadcast %22 : f32 to vector<1x1xf32>
    %24 = arith.addf %9, %23 : vector<1x1xf32>
    %c0_16 = arith.constant 0 : index
    %c0_17 = arith.constant 0 : index
    %25 = vector.load %arg11[%c0_16, %c0_17] : memref<1x1xf32, #tpu.memory_space<vmem>>, vector<1x1xf32>
    tpu.vector_store %arg11[%c0_16, %c0_17], %24 {strides = array<i32>} : memref<1x1xf32, #tpu.memory_space<vmem>>, vector<1x1xf32>,
    %c0_18 = arith.constant 0 : index
    %c0_19 = arith.constant 0 : index
    %26 = vector.load %arg12[%c0_18, %c0_19] : memref<1x1xf32, #tpu.memory_space<vmem>>, vector<1x1xf32>
    %c0_20 = arith.constant 0 : index
    %c0_21 = arith.constant 0 : index
    %c0_22 = arith.constant 0 : index
    %27 = vector.load %arg8[%c0_20, %c0_21, %c0_22] : memref<1x8x8xf32, #tpu.memory_space<vmem>>, vector<1x8x8xf32>
    %28 = vector.shape_cast %27 : vector<1x8x8xf32> to vector<8x8xf32>
    %c0_23 = arith.constant 0 : index
    %c0_24 = arith.constant 0 : index
    %29 = vector.load %arg3[%c0_23, %c0_24] : memref<16x8xf32, #tpu.memory_space<vmem>>, vector<16x8xf32>
    %cst_25 = arith.constant dense<0.000000e+00> : vector<16x8xf32>
    %30 = tpu.matmul %29, %28, %cst_25 {dimension_numbers = #tpu.dot_dimension_numbers<[1], [0], [0], [1], [0, 0, 1, 1], [], []>} : vector<16x8xf32>, vector<8x8xf32>, vector<16x8xf32> -> vector<16x8xf32>
    %c0_26 = arith.constant 0 : index
    %c0_27 = arith.constant 0 : index
    %31 = vector.load %arg4[%c0_26, %c0_27] : memref<8x16xf32, #tpu.memory_space<vmem>>, vector<8x16xf32>
    %cst_28 = arith.constant dense<0.000000e+00> : vector<16x16xf32>
    %32 = tpu.matmul %30, %31, %cst_28 {dimension_numbers = #tpu.dot_dimension_numbers<[1], [0], [0], [1], [0, 0, 1, 1], [], []>} : vector<16x8xf32>, vector<8x16xf32>, vector<16x16xf32> -> vector<16x16xf32>
    %33 = arith.subf %32, %4 : vector<16x16xf32>
    %34 = arith.mulf %33, %33 : vector<16x16xf32>
    %35 = arith.mulf %34, %8 : vector<16x16xf32>
    %36 = vector.shape_cast %35 : vector<16x16xf32> to vector<1x16x16xf32>
    %cst_29 = arith.constant dense<0.000000e+00> : vector<1xf32>
    %37 = vector.multi_reduction <add>, %36, %cst_29 [1, 2] : vector<1x16x16xf32> to vector<1xf32>
    %38 = vector.shape_cast %37 : vector<1xf32> to vector<1x1x1xf32>
    %39 = vector.extract %38[0, 0, 0] : f32 from vector<1x1x1xf32>
    %40 = vector.broadcast %39 : f32 to vector<1x1xf32>
    %41 = arith.addf %26, %40 : vector<1x1xf32>
    %c0_30 = arith.constant 0 : index
    %c0_31 = arith.constant 0 : index
    %42 = vector.load %arg12[%c0_30, %c0_31] : memref<1x1xf32, #tpu.memory_space<vmem>>, vector<1x1xf32>
    tpu.vector_store %arg12[%c0_30, %c0_31], %41 {strides = array<i32>} : memref<1x1xf32, #tpu.memory_space<vmem>>, vector<1x1xf32>,
    %c0_32 = arith.constant 0 : index
    %c0_33 = arith.constant 0 : index
    %43 = vector.load %arg13[%c0_32, %c0_33] : memref<1x1xf32, #tpu.memory_space<vmem>>, vector<1x1xf32>
    %c0_34 = arith.constant 0 : index
    %c0_35 = arith.constant 0 : index
    %c0_36 = arith.constant 0 : index
    %44 = vector.load %arg9[%c0_34, %c0_35, %c0_36] : memref<1x8x8xf32, #tpu.memory_space<vmem>>, vector<1x8x8xf32>
    %45 = vector.shape_cast %44 : vector<1x8x8xf32> to vector<8x8xf32>
    %c0_37 = arith.constant 0 : index
    %c0_38 = arith.constant 0 : index
    %46 = vector.load %arg5[%c0_37, %c0_38] : memref<16x8xf32, #tpu.memory_space<vmem>>, vector<16x8xf32>
    %cst_39 = arith.constant dense<0.000000e+00> : vector<16x8xf32>
    %47 = tpu.matmul %46, %45, %cst_39 {dimension_numbers = #tpu.dot_dimension_numbers<[1], [0], [0], [1], [0, 0, 1, 1], [], []>} : vector<16x8xf32>, vector<8x8xf32>, vector<16x8xf32> -> vector<16x8xf32>
    %c0_40 = arith.constant 0 : index
    %c0_41 = arith.constant 0 : index
    %48 = vector.load %arg6[%c0_40, %c0_41] : memref<8x16xf32, #tpu.memory_space<vmem>>, vector<8x16xf32>
    %cst_42 = arith.constant dense<0.000000e+00> : vector<16x16xf32>
    %49 = tpu.matmul %47, %48, %cst_42 {dimension_numbers = #tpu.dot_dimension_numbers<[1], [0], [0], [1], [0, 0, 1, 1], [], []>} : vector<16x8xf32>, vector<8x16xf32>, vector<16x16xf32> -> vector<16x16xf32>
    %50 = arith.subf %49, %4 : vector<16x16xf32>
    %51 = arith.mulf %50, %50 : vector<16x16xf32>
    %52 = arith.mulf %51, %8 : vector<16x16xf32>
    %53 = vector.shape_cast %52 : vector<16x16xf32> to vector<1x16x16xf32>
    %cst_43 = arith.constant dense<0.000000e+00> : vector<1xf32>
    %54 = vector.multi_reduction <add>, %53, %cst_43 [1, 2] : vector<1x16x16xf32> to vector<1xf32>
    %55 = vector.shape_cast %54 : vector<1xf32> to vector<1x1x1xf32>
    %56 = vector.extract %55[0, 0, 0] : f32 from vector<1x1x1xf32>
    %57 = vector.broadcast %56 : f32 to vector<1x1xf32>
    %58 = arith.addf %43, %57 : vector<1x1xf32>
    %c0_44 = arith.constant 0 : index
    %c0_45 = arith.constant 0 : index
    %59 = vector.load %arg13[%c0_44, %c0_45] : memref<1x1xf32, #tpu.memory_space<vmem>>, vector<1x1xf32>
    tpu.vector_store %arg13[%c0_44, %c0_45], %58 {strides = array<i32>} : memref<1x1xf32, #tpu.memory_space<vmem>>, vector<1x1xf32>,
    %c0_46 = arith.constant 0 : index
    %c0_47 = arith.constant 0 : index
    %60 = vector.load %arg14[%c0_46, %c0_47] : memref<1x1xf32, #tpu.memory_space<vmem>>, vector<1x1xf32>
    %cst_48 = arith.constant 0.000000e+00 : f32
    %61 = vector.broadcast %cst_48 : f32 to vector<16x16xf32>
    %62 = arith.cmpf ogt, %8, %61 : vector<16x16xf32>
    %63 = arith.extui %62 : vector<16x16xi1> to vector<16x16xi32>
    %64 = arith.sitofp %63 : vector<16x16xi32> to vector<16x16xf32>
    %65 = vector.shape_cast %64 : vector<16x16xf32> to vector<1x16x16xf32>
    %cst_49 = arith.constant dense<0.000000e+00> : vector<1xf32>
    %66 = vector.multi_reduction <add>, %65, %cst_49 [1, 2] : vector<1x16x16xf32> to vector<1xf32>
    %67 = vector.shape_cast %66 : vector<1xf32> to vector<1x1x1xf32>
    %68 = vector.extract %67[0, 0, 0] : f32 from vector<1x1x1xf32>
    %69 = vector.broadcast %68 : f32 to vector<1x1xf32>
    %70 = arith.addf %60, %69 : vector<1x1xf32>
    %c0_50 = arith.constant 0 : index
    %c0_51 = arith.constant 0 : index
    %71 = vector.load %arg14[%c0_50, %c0_51] : memref<1x1xf32, #tpu.memory_space<vmem>>, vector<1x1xf32>
    tpu.vector_store %arg14[%c0_50, %c0_51], %70 {strides = array<i32>} : memref<1x1xf32, #tpu.memory_space<vmem>>, vector<1x1xf32>,
    return
  }
  func.func @transform_0(%arg0: i32) -> (i32, i32) {
    %c0_i32 = arith.constant 0 : i32
    %c0_i32_0 = arith.constant 0 : i32
    %c0_i32_1 = arith.constant 0 : i32
    return %c0_i32, %c0_i32_0 : i32, i32
  }
  func.func @transform_1(%arg0: i32) -> (i32, i32) {
    %c0_i32 = arith.constant 0 : i32
    %c0_i32_0 = arith.constant 0 : i32
    %c0_i32_1 = arith.constant 0 : i32
    return %c0_i32, %c0_i32_0 : i32, i32
  }
  func.func @transform_2(%arg0: i32) -> (i32, i32) {
    %c0_i32 = arith.constant 0 : i32
    %c0_i32_0 = arith.constant 0 : i32
    %c0_i32_1 = arith.constant 0 : i32
    return %c0_i32, %c0_i32_0 : i32, i32
  }
  func.func @transform_3(%arg0: i32) -> (i32, i32) {
    %c0_i32 = arith.constant 0 : i32
    %c0_i32_0 = arith.constant 0 : i32
    %c0_i32_1 = arith.constant 0 : i32
    return %c0_i32, %c0_i32_0 : i32, i32
  }
  func.func @transform_4(%arg0: i32) -> (i32, i32) {
    %c0_i32 = arith.constant 0 : i32
    %c0_i32_0 = arith.constant 0 : i32
    %c0_i32_1 = arith.constant 0 : i32
    return %c0_i32, %c0_i32_0 : i32, i32
  }
  func.func @transform_5(%arg0: i32) -> (i32, i32) {
    %c0_i32 = arith.constant 0 : i32
    %c0_i32_0 = arith.constant 0 : i32
    %c0_i32_1 = arith.constant 0 : i32
    return %c0_i32, %c0_i32_0 : i32, i32
  }
  func.func @transform_6(%arg0: i32) -> (i32, i32, i32) {
    %c0_i32 = arith.constant 0 : i32
    %c0_i32_0 = arith.constant 0 : i32
    %c0_i32_1 = arith.constant 0 : i32
    return %arg0, %c0_i32, %c0_i32_0 : i32, i32, i32
  }
  func.func @transform_7(%arg0: i32) -> (i32, i32, i32) {
    %c0_i32 = arith.constant 0 : i32
    %c0_i32_0 = arith.constant 0 : i32
    %c0_i32_1 = arith.constant 0 : i32
    return %arg0, %c0_i32, %c0_i32_0 : i32, i32, i32
  }
  func.func @transform_8(%arg0: i32) -> (i32, i32, i32) {
    %c0_i32 = arith.constant 0 : i32
    %c0_i32_0 = arith.constant 0 : i32
    %c0_i32_1 = arith.constant 0 : i32
    return %arg0, %c0_i32, %c0_i32_0 : i32, i32, i32
  }
  func.func @transform_9(%arg0: i32) -> (i32, i32, i32) {
    %c0_i32 = arith.constant 0 : i32
    %c0_i32_0 = arith.constant 0 : i32
    %c0_i32_1 = arith.constant 0 : i32
    return %arg0, %c0_i32, %c0_i32_0 : i32, i32, i32
  }
  func.func @transform_10(%arg0: i32) -> (i32, i32) {
    %c0_i32 = arith.constant 0 : i32
    %c0_i32_0 = arith.constant 0 : i32
    %c0_i32_1 = arith.constant 0 : i32
    return %c0_i32, %c0_i32_0 : i32, i32
  }
  func.func @transform_11(%arg0: i32) -> (i32, i32) {
    %c0_i32 = arith.constant 0 : i32
    %c0_i32_0 = arith.constant 0 : i32
    %c0_i32_1 = arith.constant 0 : i32
    return %c0_i32, %c0_i32_0 : i32, i32
  }
  func.func @transform_12(%arg0: i32) -> (i32, i32) {
    %c0_i32 = arith.constant 0 : i32
    %c0_i32_0 = arith.constant 0 : i32
    %c0_i32_1 = arith.constant 0 : i32
    return %c0_i32, %c0_i32_0 : i32, i32
  }
  func.func @transform_13(%arg0: i32) -> (i32, i32) {
    %c0_i32 = arith.constant 0 : i32
    %c0_i32_0 = arith.constant 0 : i32
    %c0_i32_1 = arith.constant 0 : i32
    return %c0_i32, %c0_i32_0 : i32, i32
  }
}

</mosaic_0001>

<llo_original>
// kernel: tpu_custom_call.1
$region0: #{tpu_custom_call.1}
  #allocation0 [shape = 'u32[]', space=smem, size = 0x4, offset = 0x4, fixed_abs, tag = 'smem constant byte address 0x4 - core index']
  #allocation1 [shape = 'u32[144,128]{1,0:T(1,128)}', space=vmem, size = 0x12000, scoped, tag = 'internal scratch']
  %s0 = inlined_call_operand.hbm [shape: f32[16,16], index: 0, kind: input, shape index: {}]
  %s1 = inlined_call_operand.hbm [shape: f32[16,16], index: 1, kind: input, shape index: {}]
  %s2 = inlined_call_operand.vmem [shape: f32[16,8], index: 2, kind: input, shape index: {}]
  %s3 = inlined_call_operand.hbm [shape: f32[8,16], index: 3, kind: input, shape index: {}]
  %s4 = inlined_call_operand.vmem [shape: f32[16,8], index: 4, kind: input, shape index: {}]
  %s5 = inlined_call_operand.hbm [shape: f32[8,16], index: 5, kind: input, shape index: {}]
  %s6 = inlined_call_operand.vmem [shape: f32[2,16,16], index: 6, kind: input, shape index: {}]
  %s7 = inlined_call_operand.hbm [shape: f32[2,8,8], index: 7, kind: input, shape index: {}]
  %s8 = inlined_call_operand.hbm [shape: f32[2,8,8], index: 8, kind: input, shape index: {}]
  %s9 = inlined_call_operand.vmem [shape: f32[2,16,16], index: 9, kind: input, shape index: {}]
  %s10 = inlined_call_operand.hbm [shape: f32[1,1], index: 10, kind: output, shape index: {0}]
  %s11 = inlined_call_operand.hbm [shape: f32[1,1], index: 11, kind: output, shape index: {1}]
  %s12 = inlined_call_operand.hbm [shape: f32[1,1], index: 12, kind: output, shape index: {2}]
  %s13 = inlined_call_operand.hbm [shape: f32[1,1], index: 13, kind: output, shape index: {3}]
  %14 = xla_tuple %s10, %s11, %s12, %s13
  %s15 = sld [smem:[#allocation0]]
  $region125: #{tpu_custom_call.1} parent=0
    _
  %s17 = ssub.s32 1, %s15
  %s18 = scalar_select 0, %s17, %s15
  $region1: #{tpu_custom_call.1} parent=0
    #allocation2 [shape = 'u8[8192]{0}', space=vmem, size = 0x2000, scoped, tag = 'input window, operand 0, single buffered']
    #allocation3 [shape = 's32[2]{0}', space=sflag, size = 0x8, scoped, tag = 'scoped memory for tpu_custom_call.1']
    #allocation4 [shape = 's32[2]{0}', space=sflag, size = 0x8, scoped, tag = 'scoped memory for tpu_custom_call.1']
    #allocation5 [shape = 'u8[8192]{0}', space=vmem, size = 0x2000, scoped, tag = 'input window, operand 1, single buffered']
    #allocation6 [shape = 's32[1]{0}', space=sflag, size = 0x4, scoped, tag = 'scoped memory for tpu_custom_call.1']
    #allocation7 [shape = 'u8[4096]{0}', space=vmem, size = 0x1000, scoped, tag = 'input window, operand 3, single buffered']
    #allocation8 [shape = 'u8[4096]{0}', space=vmem, size = 0x1000, scoped, tag = 'input window, operand 5, single buffered']
    #allocation9 [shape = 's32[1]{0}', space=sflag, size = 0x4, scoped, tag = 'scoped memory for tpu_custom_call.1']
    #allocation10 [shape = 'u8[8192]{0}', space=vmem, size = 0x2000, scoped, tag = 'input window, operand 7']
    #allocation11 [shape = 'u8[8192]{0}', space=vmem, size = 0x2000, scoped, tag = 'input window, operand 8']
    #allocation12 [shape = 'u8[512]{0}', space=vmem, size = 0x400, scoped, tag = 'output window, operand 0, single buffered']
    #allocation13 [shape = 'u8[512]{0}', space=vmem, size = 0x400, scoped, tag = 'output window, operand 1, single buffered']
    #allocation14 [shape = 's32[1]{0}', space=sflag, size = 0x4, scoped, tag = 'scoped memory for tpu_custom_call.1']
    #allocation15 [shape = 'u8[512]{0}', space=vmem, size = 0x400, scoped, tag = 'output window, operand 2, single buffered']
    #allocation16 [shape = 'u8[512]{0}', space=vmem, size = 0x400, scoped, tag = 'output window, operand 3, single buffered']
    #allocation17 [shape = 's32[1]{0}', space=sflag, size = 0x4, scoped, tag = 'scoped memory for tpu_custom_call.1']
    %19 = vsyncpa [#allocation3], 0
    %20 = vsyncpa [#allocation6], 0
    %21 = vsyncpa [#allocation9], 0
    %22 = vsyncpa [#allocation4], 0
    %23 = vsyncpa [#allocation14], 0
    %24 = vsyncpa [#allocation17], 0
    loop: start=0, step=1, limit=4
    $region2: #{tpu_custom_call.1} parent=1 // loop_pre_header
      _
    $region3: #{tpu_custom_call.1} parent=1 // loop_header
      %s26 = sphi 0, %s30
      %p27 = scmp.ge.s32.totalorder %s26, 4
      %s34 = sphi 0, %s34
      %s36 = sphi 0, %s34
      %s37 = sphi 0, %s36
      %s51 = sphi 0, %s37
      %s55 = sphi 0, %s55
      %s57 = sphi 0, %s55
      %s58 = sphi 0, %s57
      %s72 = sphi 0, %s58
      %s76 = sphi 0, %s76
      %s78 = sphi 0, %s76
      %s79 = sphi 0, %s78
      %s93 = sphi 0, %s79
      %s97 = sphi 0, %s97
      %s99 = sphi 0, %s97
      %s100 = sphi 0, %s99
      %s114 = sphi 0, %s100
      %s118 = sphi 0, %s118
      %s120 = sphi 0, %s118
      %s121 = sphi 0, %s120
      %s135 = sphi 0, %s121
      %s139 = sphi 0, %s139
      %s141 = sphi 0, %s139
      %s142 = sphi 0, %s141
      %s156 = sphi 0, %s142
      %s162 = sphi 0, %s164
      %s165 = sphi 0, %s162
      %s166 = sphi 0, %s165
      %s182 = sphi 0, %s166
      %s188 = sphi 0, %s190
      %s191 = sphi 0, %s188
      %s192 = sphi 0, %s191
      %s208 = sphi 0, %s192
      %s214 = sphi 0, %s216
      %s217 = sphi 0, %s214
      %s218 = sphi 0, %s217
      %s234 = sphi 0, %s218
      %s240 = sphi 0, %s242
      %s243 = sphi 0, %s240
      %s244 = sphi 0, %s243
      %s260 = sphi 0, %s244
      %s264 = sphi 0, %s264
      %s266 = sphi 0, %s264
      %s267 = sphi 0, %s266
      %s281 = sphi 0, %s267
      %s285 = sphi 0, %s285
      %s287 = sphi 0, %s285
      %s288 = sphi 0, %s287
      %s302 = sphi 0, %s288
      %s306 = sphi 0, %s306
      %s308 = sphi 0, %s306
      %s309 = sphi 0, %s308
      %s323 = sphi 0, %s309
      %s327 = sphi 0, %s327
      %s329 = sphi 0, %s327
      %s330 = sphi 0, %s329
      %s344 = sphi 0, %s330
    $region4: #{tpu_custom_call.1} parent=1 // loop_header_branch
      %29 = sbr.rel (%p27) target = $region8
    $region5: #{tpu_custom_call.1} parent=1 // loop_body
      %s31 = ssub.s32 %s26, 1
      %s32 = ssub.s32 %s26, 2
      %s33 = sadd.s32 %s26, 1
      %s35 = sadd.s32 %s34, 1
      %p38 = scmp.eq.s32.totalorder %s26, 1
      %p39 = scmp.ne.s32.totalorder %s34, %s36
      %p40 = scmp.eq.s32.totalorder %s26, 0
      %p41 = por %p39, %p40
      %p42 = scmp.ne.s32.totalorder %s34, %s36
      %p43 = scmp.eq.s32.totalorder %s31, 1
      %p44 = por %p42, %p43
      %p45 = scmp.ne.s32.totalorder %s36, %s37
      %p46 = scmp.eq.s32.totalorder %s31, 0
      %p47 = por %p45, %p46
      %p48 = scmp.ne.s32.totalorder %s36, %s37
      %p49 = scmp.eq.s32.totalorder %s32, 1
      %p50 = por %p48, %p49
      %p52 = scmp.ne.s32.totalorder %s37, %s51
      %p53 = scmp.eq.s32.totalorder %s32, 0
      %p54 = por %p52, %p53
      %s56 = sadd.s32 %s55, 1
      %p59 = scmp.eq.s32.totalorder %s26, 1
      %p60 = scmp.ne.s32.totalorder %s55, %s57
      %p61 = scmp.eq.s32.totalorder %s26, 0
      %p62 = por %p60, %p61
      %p63 = scmp.ne.s32.totalorder %s55, %s57
      %p64 = scmp.eq.s32.totalorder %s31, 1
      %p65 = por %p63, %p64
      %p66 = scmp.ne.s32.totalorder %s57, %s58
      %p67 = scmp.eq.s32.totalorder %s31, 0
      %p68 = por %p66, %p67
      %p69 = scmp.ne.s32.totalorder %s57, %s58
      %p70 = scmp.eq.s32.totalorder %s32, 1
      %p71 = por %p69, %p70
      %p73 = scmp.ne.s32.totalorder %s58, %s72
      %p74 = scmp.eq.s32.totalorder %s32, 0
      %p75 = por %p73, %p74
      %s77 = sadd.s32 %s76, 1
      %p80 = scmp.eq.s32.totalorder %s26, 1
      %p81 = scmp.ne.s32.totalorder %s76, %s78
      %p82 = scmp.eq.s32.totalorder %s26, 0
      %p83 = por %p81, %p82
      %p84 = scmp.ne.s32.totalorder %s76, %s78
      %p85 = scmp.eq.s32.totalorder %s31, 1
      %p86 = por %p84, %p85
      %p87 = scmp.ne.s32.totalorder %s78, %s79
      %p88 = scmp.eq.s32.totalorder %s31, 0
      %p89 = por %p87, %p88
      %p90 = scmp.ne.s32.totalorder %s78, %s79
      %p91 = scmp.eq.s32.totalorder %s32, 1
      %p92 = por %p90, %p91
      %p94 = scmp.ne.s32.totalorder %s79, %s93
      %p95 = scmp.eq.s32.totalorder %s32, 0
      %p96 = por %p94, %p95
      %s98 = sadd.s32 %s97, 1
      %p101 = scmp.eq.s32.totalorder %s26, 1
      %p102 = scmp.ne.s32.totalorder %s97, %s99
      %p103 = scmp.eq.s32.totalorder %s26, 0
      %p104 = por %p102, %p103
      %p105 = scmp.ne.s32.totalorder %s97, %s99
      %p106 = scmp.eq.s32.totalorder %s31, 1
      %p107 = por %p105, %p106
      %p108 = scmp.ne.s32.totalorder %s99, %s100
      %p109 = scmp.eq.s32.totalorder %s31, 0
      %p110 = por %p108, %p109
      %p111 = scmp.ne.s32.totalorder %s99, %s100
      %p112 = scmp.eq.s32.totalorder %s32, 1
      %p113 = por %p111, %p112
      %p115 = scmp.ne.s32.totalorder %s100, %s114
      %p116 = scmp.eq.s32.totalorder %s32, 0
      %p117 = por %p115, %p116
      %s119 = sadd.s32 %s118, 1
      %p122 = scmp.eq.s32.totalorder %s26, 1
      %p123 = scmp.ne.s32.totalorder %s118, %s120
      %p124 = scmp.eq.s32.totalorder %s26, 0
      %p125 = por %p123, %p124
      %p126 = scmp.ne.s32.totalorder %s118, %s120
      %p127 = scmp.eq.s32.totalorder %s31, 1
      %p128 = por %p126, %p127
      %p129 = scmp.ne.s32.totalorder %s120, %s121
      %p130 = scmp.eq.s32.totalorder %s31, 0
      %p131 = por %p129, %p130
      %p132 = scmp.ne.s32.totalorder %s120, %s121
      %p133 = scmp.eq.s32.totalorder %s32, 1
      %p134 = por %p132, %p133
      %p136 = scmp.ne.s32.totalorder %s121, %s135
      %p137 = scmp.eq.s32.totalorder %s32, 0
      %p138 = por %p136, %p137
      %s140 = sadd.s32 %s139, 1
      %p143 = scmp.eq.s32.totalorder %s26, 1
      %p144 = scmp.ne.s32.totalorder %s139, %s141
      %p145 = scmp.eq.s32.totalorder %s26, 0
      %p146 = por %p144, %p145
      %p147 = scmp.ne.s32.totalorder %s139, %s141
      %p148 = scmp.eq.s32.totalorder %s31, 1
      %p149 = por %p147, %p148
      %p150 = scmp.ne.s32.totalorder %s141, %s142
      %p151 = scmp.eq.s32.totalorder %s31, 0
      %p152 = por %p150, %p151
      %p153 = scmp.ne.s32.totalorder %s141, %s142
      %p154 = scmp.eq.s32.totalorder %s32, 1
      %p155 = por %p153, %p154
      %p157 = scmp.ne.s32.totalorder %s142, %s156
      %p158 = scmp.eq.s32.totalorder %s32, 0
      %p159 = por %p157, %p158
      %s160 = ssub.s32 %s26, %s33
      %p161 = scmp.eq.s32.totalorder %s160, 0
      %s163 = sadd.s32 %s162, 1
      %s164 = scalar_select %p161, %s162, %s163
      %p167 = pneg %p161
      %p168 = scmp.eq.s32.totalorder %s26, 1
      %p169 = por %p167, %p168
      %p170 = scmp.ne.s32.totalorder %s162, %s165
      %p171 = scmp.eq.s32.totalorder %s26, 0
      %p172 = por %p170, %p171
      %p173 = scmp.ne.s32.totalorder %s162, %s165
      %p174 = scmp.eq.s32.totalorder %s31, 1
      %p175 = por %p173, %p174
      %p176 = scmp.ne.s32.totalorder %s165, %s166
      %p177 = scmp.eq.s32.totalorder %s31, 0
      %p178 = por %p176, %p177
      %p179 = scmp.ne.s32.totalorder %s165, %s166
      %p180 = scmp.eq.s32.totalorder %s32, 1
      %p181 = por %p179, %p180
      %p183 = scmp.ne.s32.totalorder %s166, %s182
      %p184 = scmp.eq.s32.totalorder %s32, 0
      %p185 = por %p183, %p184
      %s186 = ssub.s32 %s26, %s33
      %p187 = scmp.eq.s32.totalorder %s186, 0
      %s189 = sadd.s32 %s188, 1
      %s190 = scalar_select %p187, %s188, %s189
      %p193 = pneg %p187
      %p194 = scmp.eq.s32.totalorder %s26, 1
      %p195 = por %p193, %p194
      %p196 = scmp.ne.s32.totalorder %s188, %s191
      %p197 = scmp.eq.s32.totalorder %s26, 0
      %p198 = por %p196, %p197
      %p199 = scmp.ne.s32.totalorder %s188, %s191
      %p200 = scmp.eq.s32.totalorder %s31, 1
      %p201 = por %p199, %p200
      %p202 = scmp.ne.s32.totalorder %s191, %s192
      %p203 = scmp.eq.s32.totalorder %s31, 0
      %p204 = por %p202, %p203
      %p205 = scmp.ne.s32.totalorder %s191, %s192
      %p206 = scmp.eq.s32.totalorder %s32, 1
      %p207 = por %p205, %p206
      %p209 = scmp.ne.s32.totalorder %s192, %s208
      %p210 = scmp.eq.s32.totalorder %s32, 0
      %p211 = por %p209, %p210
      %s212 = ssub.s32 %s26, %s33
      %p213 = scmp.eq.s32.totalorder %s212, 0
      %s215 = sadd.s32 %s214, 1
      %s216 = scalar_select %p213, %s214, %s215
      %p219 = pneg %p213
      %p220 = scmp.eq.s32.totalorder %s26, 1
      %p221 = por %p219, %p220
      %p222 = scmp.ne.s32.totalorder %s214, %s217
      %p223 = scmp.eq.s32.totalorder %s26, 0
      %p224 = por %p222, %p223
      %p225 = scmp.ne.s32.totalorder %s214, %s217
      %p226 = scmp.eq.s32.totalorder %s31, 1
      %p227 = por %p225, %p226
      %p228 = scmp.ne.s32.totalorder %s217, %s218
      %p229 = scmp.eq.s32.totalorder %s31, 0
      %p230 = por %p228, %p229
      %p231 = scmp.ne.s32.totalorder %s217, %s218
      %p232 = scmp.eq.s32.totalorder %s32, 1
      %p233 = por %p231, %p232
      %p235 = scmp.ne.s32.totalorder %s218, %s234
      %p236 = scmp.eq.s32.totalorder %s32, 0
      %p237 = por %p235, %p236
      %s238 = ssub.s32 %s26, %s33
      %p239 = scmp.eq.s32.totalorder %s238, 0
      %s241 = sadd.s32 %s240, 1
      %s242 = scalar_select %p239, %s240, %s241
      %p245 = pneg %p239
      %p246 = scmp.eq.s32.totalorder %s26, 1
      %p247 = por %p245, %p246
      %p248 = scmp.ne.s32.totalorder %s240, %s243
      %p249 = scmp.eq.s32.totalorder %s26, 0
      %p250 = por %p248, %p249
      %p251 = scmp.ne.s32.totalorder %s240, %s243
      %p252 = scmp.eq.s32.totalorder %s31, 1
      %p253 = por %p251, %p252
      %p254 = scmp.ne.s32.totalorder %s243, %s244
      %p255 = scmp.eq.s32.totalorder %s31, 0
      %p256 = por %p254, %p255
      %p257 = scmp.ne.s32.totalorder %s243, %s244
      %p258 = scmp.eq.s32.totalorder %s32, 1
      %p259 = por %p257, %p258
      %p261 = scmp.ne.s32.totalorder %s244, %s260
      %p262 = scmp.eq.s32.totalorder %s32, 0
      %p263 = por %p261, %p262
      %s265 = sadd.s32 %s264, 1
      %p268 = scmp.eq.s32.totalorder %s26, 1
      %p269 = scmp.ne.s32.totalorder %s264, %s266
      %p270 = scmp.eq.s32.totalorder %s26, 0
      %p271 = por %p269, %p270
      %p272 = scmp.ne.s32.totalorder %s264, %s266
      %p273 = scmp.eq.s32.totalorder %s31, 1
      %p274 = por %p272, %p273
      %p275 = scmp.ne.s32.totalorder %s266, %s267
      %p276 = scmp.eq.s32.totalorder %s31, 0
      %p277 = por %p275, %p276
      %p278 = scmp.ne.s32.totalorder %s266, %s267
      %p279 = scmp.eq.s32.totalorder %s32, 1
      %p280 = por %p278, %p279
      %p282 = scmp.ne.s32.totalorder %s267, %s281
      %p283 = scmp.eq.s32.totalorder %s32, 0
      %p284 = por %p282, %p283
      %s286 = sadd.s32 %s285, 1
      %p289 = scmp.eq.s32.totalorder %s26, 1
      %p290 = scmp.ne.s32.totalorder %s285, %s287
      %p291 = scmp.eq.s32.totalorder %s26, 0
      %p292 = por %p290, %p291
      %p293 = scmp.ne.s32.totalorder %s285, %s287
      %p294 = scmp.eq.s32.totalorder %s31, 1
      %p295 = por %p293, %p294
      %p296 = scmp.ne.s32.totalorder %s287, %s288
      %p297 = scmp.eq.s32.totalorder %s31, 0
      %p298 = por %p296, %p297
      %p299 = scmp.ne.s32.totalorder %s287, %s288
      %p300 = scmp.eq.s32.totalorder %s32, 1
      %p301 = por %p299, %p300
      %p303 = scmp.ne.s32.totalorder %s288, %s302
      %p304 = scmp.eq.s32.totalorder %s32, 0
      %p305 = por %p303, %p304
      %s307 = sadd.s32 %s306, 1
      %p310 = scmp.eq.s32.totalorder %s26, 1
      %p311 = scmp.ne.s32.totalorder %s306, %s308
      %p312 = scmp.eq.s32.totalorder %s26, 0
      %p313 = por %p311, %p312
      %p314 = scmp.ne.s32.totalorder %s306, %s308
      %p315 = scmp.eq.s32.totalorder %s31, 1
      %p316 = por %p314, %p315
      %p317 = scmp.ne.s32.totalorder %s308, %s309
      %p318 = scmp.eq.s32.totalorder %s31, 0
      %p319 = por %p317, %p318
      %p320 = scmp.ne.s32.totalorder %s308, %s309
      %p321 = scmp.eq.s32.totalorder %s32, 1
      %p322 = por %p320, %p321
      %p324 = scmp.ne.s32.totalorder %s309, %s323
      %p325 = scmp.eq.s32.totalorder %s32, 0
      %p326 = por %p324, %p325
      %s328 = sadd.s32 %s327, 1
      %p331 = scmp.eq.s32.totalorder %s26, 1
      %p332 = scmp.ne.s32.totalorder %s327, %s329
      %p333 = scmp.eq.s32.totalorder %s26, 0
      %p334 = por %p332, %p333
      %p335 = scmp.ne.s32.totalorder %s327, %s329
      %p336 = scmp.eq.s32.totalorder %s31, 1
      %p337 = por %p335, %p336
      %p338 = scmp.ne.s32.totalorder %s329, %s330
      %p339 = scmp.eq.s32.totalorder %s31, 0
      %p340 = por %p338, %p339
      %p341 = scmp.ne.s32.totalorder %s329, %s330
      %p342 = scmp.eq.s32.totalorder %s32, 1
      %p343 = por %p341, %p342
      %p345 = scmp.ne.s32.totalorder %s330, %s344
      %p346 = scmp.eq.s32.totalorder %s32, 0
      %p347 = por %p345, %p346
      %p348 = scmp.le.s32.totalorder 1, %s26
      %p349 = scmp.lt.s32.totalorder %s26, 3
      %p350 = pnand %p348, %p349
      %p351 = pneg %p350
      // Predicated region
      $region9: #{tpu_custom_call.1} parent=5 // pred_check
        _
      $region10: #{tpu_custom_call.1} parent=5 // pred_check_branch
        %353 = sbr.rel (%p350) target = $region12
      $region11: #{tpu_custom_call.1} parent=5 // pred_region
        %s354 = ssub.s32 %s26, 1
        // Predicated region
        $region13: #{tpu_custom_call.1} parent=11 // pred_check
          %p355 = pneg %p47
        $region14: #{tpu_custom_call.1} parent=11 // pred_check_branch
          %357 = sbr.rel (%p355) target = $region16
        $region15: #{tpu_custom_call.1} parent=11 // pred_region
          %s359 = ssub.s32 256, 256
          %360 = vsyncadd [#allocation3], %s359
          %s361 = sshll.u32 [#allocation2], 4
          %s362 = int_to_ptr.vmem [resolvable:$true] %s361
          %367 = dma.hbm_to_vmem [thread:$0]  %s0, 256, %s362, [#allocation3], 128, 128, 8
        $region16: #{tpu_custom_call.1} parent=11 // pred_fallthru
          _
        // Predicated region
        $region17: #{tpu_custom_call.1} parent=11 // pred_check
          %p368 = pneg %p68
        $region18: #{tpu_custom_call.1} parent=11 // pred_check_branch
          %370 = sbr.rel (%p368) target = $region20
        $region19: #{tpu_custom_call.1} parent=11 // pred_region
          %s372 = ssub.s32 256, 256
          %373 = vsyncadd [#allocation6], %s372
          %s374 = sshll.u32 [#allocation5], 4
          %s375 = int_to_ptr.vmem [resolvable:$true] %s374
          %380 = dma.hbm_to_vmem [thread:$0]  %s1, 256, %s375, [#allocation6], 128, 128, 8
        $region20: #{tpu_custom_call.1} parent=11 // pred_fallthru
          _
        // Predicated region
        $region21: #{tpu_custom_call.1} parent=11 // pred_check
          %p381 = pneg %p89
        $region22: #{tpu_custom_call.1} parent=11 // pred_check_branch
          %383 = sbr.rel (%p381) target = $region24
        $region23: #{tpu_custom_call.1} parent=11 // pred_region
          _
        $region24: #{tpu_custom_call.1} parent=11 // pred_fallthru
          _
        // Predicated region
        $region25: #{tpu_custom_call.1} parent=11 // pred_check
          %p384 = pneg %p110
        $region26: #{tpu_custom_call.1} parent=11 // pred_check_branch
          %386 = sbr.rel (%p384) target = $region28
        $region27: #{tpu_custom_call.1} parent=11 // pred_region
          %s388 = ssub.s32 128, 128
          %389 = vsyncadd [#allocation6], %s388
          %s391 = sshll.u32 [#allocation7], 4
          %s392 = int_to_ptr.vmem [resolvable:$true] %s391
          %394 = dma.hbm_to_vmem [thread:$0]  %s3, 128, %s392, [#allocation6]
        $region28: #{tpu_custom_call.1} parent=11 // pred_fallthru
          _
        // Predicated region
        $region29: #{tpu_custom_call.1} parent=11 // pred_check
          %p395 = pneg %p131
        $region30: #{tpu_custom_call.1} parent=11 // pred_check_branch
          %397 = sbr.rel (%p395) target = $region32
        $region31: #{tpu_custom_call.1} parent=11 // pred_region
          _
        $region32: #{tpu_custom_call.1} parent=11 // pred_fallthru
          _
        // Predicated region
        $region33: #{tpu_custom_call.1} parent=11 // pred_check
          %p398 = pneg %p152
        $region34: #{tpu_custom_call.1} parent=11 // pred_check_branch
          %400 = sbr.rel (%p398) target = $region36
        $region35: #{tpu_custom_call.1} parent=11 // pred_region
          %s402 = ssub.s32 128, 128
          %403 = vsyncadd [#allocation9], %s402
          %s405 = sshll.u32 [#allocation8], 4
          %s406 = int_to_ptr.vmem [resolvable:$true] %s405
          %408 = dma.hbm_to_vmem [thread:$0]  %s5, 128, %s406, [#allocation9]
        $region36: #{tpu_custom_call.1} parent=11 // pred_fallthru
          _
      $region12: #{tpu_custom_call.1} parent=5 // pred_fallthru
        _
      %p409 = scmp.lt.s32.totalorder %s26, 2
      // Predicated region
      $region37: #{tpu_custom_call.1} parent=5 // pred_check
        %p410 = pneg %p409
      $region38: #{tpu_custom_call.1} parent=5 // pred_check_branch
        %412 = sbr.rel (%p410) target = $region40
      $region39: #{tpu_custom_call.1} parent=5 // pred_region
        // Predicated region
        $region41: #{tpu_custom_call.1} parent=39 // pred_check
          %p413 = pneg %p172
        $region42: #{tpu_custom_call.1} parent=39 // pred_check_branch
          %415 = sbr.rel (%p413) target = $region44
        $region43: #{tpu_custom_call.1} parent=39 // pred_region
          %p416 = scmp.lt.s32.totalorder %s26, 1
          %s417 = scalar_select %p416, %s26, 1
          %s418 = smul.addr %s417, 2
          %s419 = smul.addr %s418, 8
          %s420 = scalar_lea.vmem %s6, %s419
        $region44: #{tpu_custom_call.1} parent=39 // pred_fallthru
          _
        // Predicated region
        $region45: #{tpu_custom_call.1} parent=39 // pred_check
          %p421 = pneg %p198
        $region46: #{tpu_custom_call.1} parent=39 // pred_check_branch
          %423 = sbr.rel (%p421) target = $region48
        $region47: #{tpu_custom_call.1} parent=39 // pred_region
          %s424 = sand.u32 %s26, 1
          %s425 = scalar_lea.sflag [#allocation3], %s424
          %s426 = sand.u32 %s188, 1
          %s427 = smul.addr %s426, 8
          %s428 = scalar_lea.vmem [#allocation10], %s427
          %s430 = ssub.s32 128, 128
          %431 = vsyncadd %s425, %s430
          %s432 = smul.addr %s26, 128
          %s433 = scalar_lea.hbm %s7, %s432
          %s435 = sshll.u32 %s428, 4
          %s436 = int_to_ptr.vmem [resolvable:$true] %s435
          %438 = dma.hbm_to_vmem [thread:$0]  %s433, 128, %s436, %s425
        $region48: #{tpu_custom_call.1} parent=39 // pred_fallthru
          _
        // Predicated region
        $region49: #{tpu_custom_call.1} parent=39 // pred_check
          %p439 = pneg %p224
        $region50: #{tpu_custom_call.1} parent=39 // pred_check_branch
          %441 = sbr.rel (%p439) target = $region52
        $region51: #{tpu_custom_call.1} parent=39 // pred_region
          %s442 = sand.u32 %s26, 1
          %s443 = scalar_lea.sflag [#allocation3], %s442
          %s444 = sand.u32 %s214, 1
          %s445 = smul.addr %s444, 8
          %s446 = scalar_lea.vmem [#allocation11], %s445
          %s448 = ssub.s32 128, 128
          %449 = vsyncadd %s443, %s448
          %s450 = smul.addr %s26, 128
          %s451 = scalar_lea.hbm %s8, %s450
          %s453 = sshll.u32 %s446, 4
          %s454 = int_to_ptr.vmem [resolvable:$true] %s453
          %456 = dma.hbm_to_vmem [thread:$0]  %s451, 128, %s454, %s443
        $region52: #{tpu_custom_call.1} parent=39 // pred_fallthru
          _
        // Predicated region
        $region53: #{tpu_custom_call.1} parent=39 // pred_check
          %p457 = pneg %p250
        $region54: #{tpu_custom_call.1} parent=39 // pred_check_branch
          %459 = sbr.rel (%p457) target = $region56
        $region55: #{tpu_custom_call.1} parent=39 // pred_region
          %p460 = scmp.lt.s32.totalorder %s26, 1
          %s461 = scalar_select %p460, %s26, 1
          %s462 = smul.addr %s461, 2
          %s463 = smul.addr %s462, 8
          %s464 = scalar_lea.vmem %s9, %s463
        $region56: #{tpu_custom_call.1} parent=39 // pred_fallthru
          _
      $region40: #{tpu_custom_call.1} parent=5 // pred_fallthru
        _
      %p465 = scmp.le.s32.totalorder 1, %s26
      %p466 = scmp.lt.s32.totalorder %s26, 3
      %p467 = pnand %p465, %p466
      %p468 = pneg %p467
      // Predicated region
      $region57: #{tpu_custom_call.1} parent=5 // pred_check
        _
      $region58: #{tpu_custom_call.1} parent=5 // pred_check_branch
        %470 = sbr.rel (%p467) target = $region60
      $region59: #{tpu_custom_call.1} parent=5 // pred_region
        %s471 = ssub.s32 %s26, 1
        // Predicated region
        $region61: #{tpu_custom_call.1} parent=59 // pred_check
          %p472 = pneg %p47
        $region62: #{tpu_custom_call.1} parent=59 // pred_check_branch
          %474 = sbr.rel (%p472) target = $region64
        $region63: #{tpu_custom_call.1} parent=59 // pred_region
          %475 = dma.done [#allocation3], 256
        $region64: #{tpu_custom_call.1} parent=59 // pred_fallthru
          _
        // Predicated region
        $region65: #{tpu_custom_call.1} parent=59 // pred_check
          %p476 = pneg %p68
        $region66: #{tpu_custom_call.1} parent=59 // pred_check_branch
          %478 = sbr.rel (%p476) target = $region68
        $region67: #{tpu_custom_call.1} parent=59 // pred_region
          %479 = dma.done [#allocation6], 256
        $region68: #{tpu_custom_call.1} parent=59 // pred_fallthru
          _
        // Predicated region
        $region69: #{tpu_custom_call.1} parent=59 // pred_check
          %p480 = pneg %p110
        $region70: #{tpu_custom_call.1} parent=59 // pred_check_branch
          %482 = sbr.rel (%p480) target = $region72
        $region71: #{tpu_custom_call.1} parent=59 // pred_region
          %483 = dma.done [#allocation6], 128
        $region72: #{tpu_custom_call.1} parent=59 // pred_fallthru
          _
        // Predicated region
        $region73: #{tpu_custom_call.1} parent=59 // pred_check
          %p484 = pneg %p152
        $region74: #{tpu_custom_call.1} parent=59 // pred_check_branch
          %486 = sbr.rel (%p484) target = $region76
        $region75: #{tpu_custom_call.1} parent=59 // pred_region
          %487 = dma.done [#allocation9], 128
        $region76: #{tpu_custom_call.1} parent=59 // pred_fallthru
          _
        %s488 = sand.u32 %s31, 1
        %s489 = scalar_lea.sflag [#allocation3], %s488
        %s490 = sand.u32 %s191, 1
        %s491 = smul.addr %s490, 8
        %s492 = scalar_lea.vmem [#allocation10], %s491
        // Predicated region
        $region77: #{tpu_custom_call.1} parent=59 // pred_check
          %p493 = pneg %p204
        $region78: #{tpu_custom_call.1} parent=59 // pred_check_branch
          %495 = sbr.rel (%p493) target = $region80
        $region79: #{tpu_custom_call.1} parent=59 // pred_region
          %496 = dma.done %s489, 128
        $region80: #{tpu_custom_call.1} parent=59 // pred_fallthru
          _
        %s497 = sand.u32 %s31, 1
        %s498 = scalar_lea.sflag [#allocation3], %s497
        %s499 = sand.u32 %s217, 1
        %s500 = smul.addr %s499, 8
        %s501 = scalar_lea.vmem [#allocation11], %s500
        // Predicated region
        $region81: #{tpu_custom_call.1} parent=59 // pred_check
          %p502 = pneg %p230
        $region82: #{tpu_custom_call.1} parent=59 // pred_check_branch
          %504 = sbr.rel (%p502) target = $region84
        $region83: #{tpu_custom_call.1} parent=59 // pred_region
          %505 = dma.done %s498, 128
        $region84: #{tpu_custom_call.1} parent=59 // pred_fallthru
          _
        %p506 = pneg %p47
        %p507 = pneg %p44
        %p508 = pneg %p68
        %p509 = pneg %p65
        %p510 = pneg %p89
        %p511 = pneg %p86
        %p512 = pneg %p110
        %p513 = pneg %p107
        %p514 = pneg %p131
        %p515 = pneg %p128
        %p516 = pneg %p152
        %p517 = pneg %p149
        %p518 = scmp.lt.s32.totalorder %s31, 1
        %s519 = scalar_select %p518, %s31, 1
        %s520 = smul.addr %s519, 2
        %s521 = smul.addr %s520, 8
        %s522 = scalar_lea.vmem %s6, %s521
        %p523 = pneg %p178
        %p524 = pneg %p175
        %s525 = sand.u32 %s31, 1
        %s526 = scalar_lea.sflag [#allocation3], %s525
        %s527 = sand.u32 %s191, 1
        %s528 = smul.addr %s527, 8
        %s529 = scalar_lea.vmem [#allocation10], %s528
        %p530 = pneg %p204
        %p531 = pneg %p201
        %s532 = sand.u32 %s31, 1
        %s533 = scalar_lea.sflag [#allocation3], %s532
        %s534 = sand.u32 %s217, 1
        %s535 = smul.addr %s534, 8
        %s536 = scalar_lea.vmem [#allocation11], %s535
        %p537 = pneg %p230
        %p538 = pneg %p227
        %p539 = scmp.lt.s32.totalorder %s31, 1
        %s540 = scalar_select %p539, %s31, 1
        %s541 = smul.addr %s540, 2
        %s542 = smul.addr %s541, 8
        %s543 = scalar_lea.vmem %s9, %s542
        %p544 = pneg %p256
        %p545 = pneg %p253
        %p546 = pneg %p277
        %p547 = pneg %p274
        %p548 = pneg %p298
        %p549 = pneg %p295
        %p550 = pneg %p319
        %p551 = pneg %p316
        %p552 = pneg %p340
        %p553 = pneg %p337
        %p554 = scmp.lt.s32.totalorder %s31, 1
        %s555 = scalar_select %p554, %s31, 1
        %s556 = smul.addr %s555, 2
        %s557 = smul.addr %s556, 8
        %s558 = scalar_lea.vmem %s6, %s557
        %p559 = scmp.lt.s32.totalorder %s31, 1
        %s560 = scalar_select %p559, %s31, 1
        %s561 = smul.addr %s560, 2
        %s562 = smul.addr %s561, 8
        %s563 = scalar_lea.vmem %s9, %s562
        %p564 = scmp.eq.s32.totalorder %s31, 0
        // Predicated region
        $region85: #{tpu_custom_call.1} parent=59 // pred_check
          %p565 = pneg %p564
        $region86: #{tpu_custom_call.1} parent=59 // pred_check_branch
          %567 = sbr.rel (%p565) target = $region88
        $region87: #{tpu_custom_call.1} parent=59 // pred_region
          %vm568 = vcmask 0
          %569 = vst.msk [vmem:[#allocation12] sm:$0x1] %vm568, 0.0
          %570 = vst.msk [vmem:[#allocation13] sm:$0x1] %vm568, 0.0
          %571 = vst.msk [vmem:[#allocation15] sm:$0x1] %vm568, 0.0
          %572 = vst.msk [vmem:[#allocation16] sm:$0x1] %vm568, 0.0
        $region88: #{tpu_custom_call.1} parent=59 // pred_fallthru
          _
        %v573 = vld [vmem:[%s563] sm:$0xff]
        %v574 = vld [vmem:[%s563 + $0x8] sm:$0xff]
        %vm575 = vcmp.gt.f32.partialorder %v573, 0.0
        %vm576 = vcmp.gt.f32.partialorder %v574, 0.0
        %v577 = vsel %vm575, 1.0, %v573
        %v578 = vsel %vm576, 1.0, %v574
        %v579 = vld [vmem:[#allocation12] sm:$0x1]
        %v580 = vld [vmem:[%s558] sm:$0xff]
        %v581 = vld [vmem:[%s558 + $0x8] sm:$0xff]
        %v582 = vld [vmem:[#allocation2] sm:$0xff]
        %v583 = vld [vmem:[#allocation2 + $0x8] sm:$0xff]
        %vm584 = vcmask 130048
        %v586 = vsel %vm584, %v582, 0
        %v589 = vsel %vm584, %v583, 0
        %591 = vmatprep.subr.mxu0 0.0
        %592 = vmatpush1.msra.mxu0 %v580
        %593 = vmatprep.subr.mxu0 0.0
        %594 = vmatpush1.msra.mxu0 %v581
        %595 = vmatprep.subr.mxu0 0.0
        %596 = vmatpush1.msra.mxu0 0.0
        %597 = vmatprep.subr.mxu0 0.0
        %598 = vmatpush1.msra.mxu0 0.0
        %599 = vmatprep.subr.mxu0 0.0
        %600 = vmatpush1.msra.mxu0 0.0
        %601 = vmatprep.subr.mxu0 0.0
        %602 = vmatpush1.msra.mxu0 0.0
        %603 = vmatprep.subr.mxu0 0.0
        %604 = vmatpush1.msra.mxu0 0.0
        %605 = vmatprep.subr.mxu0 0.0
        %606 = vmatpush1.msra.mxu0 0.0
        %607 = vmatprep.subr.mxu0 0.0
        %608 = vmatpush1.msra.mxu0 0.0
        %609 = vmatprep.subr.mxu0 0.0
        %610 = vmatpush1.msra.mxu0 0.0
        %611 = vmatprep.subr.mxu0 0.0
        %612 = vmatpush1.msra.mxu0 0.0
        %613 = vmatprep.subr.mxu0 0.0
        %614 = vmatpush1.msra.mxu0 0.0
        %615 = vmatprep.subr.mxu0 0.0
        %616 = vmatpush1.msra.mxu0 0.0
        %617 = vmatprep.subr.mxu0 0.0
        %618 = vmatpush1.msra.mxu0 0.0
        %619 = vmatprep.subr.mxu0 0.0
        %620 = vmatpush1.msra.mxu0 0.0
        %621 = vmatprep.subr.mxu0 0.0
        %622 = vmatpush1.msra.mxu0 0.0
        %623 = vmatprep.subr.mxu0 0.0
        %624 = vmatpush1.msra.mxu0 0.0
        %625 = vmatprep.subr.mxu0 0.0
        %626 = vmatpush1.msra.mxu0 0.0
        %627 = vmatprep.subr.mxu0 0.0
        %628 = vmatpush1.msra.mxu0 0.0
        %629 = vmatprep.subr.mxu0 0.0
        %630 = vmatpush1.msra.mxu0 0.0
        %631 = vmatprep.subr.mxu0 0.0
        %632 = vmatpush1.msra.mxu0 0.0
        %633 = vmatprep.subr.mxu0 0.0
        %634 = vmatpush1.msra.mxu0 0.0
        %635 = vmatprep.subr.mxu0 0.0
        %636 = vmatpush1.msra.mxu0 0.0
        %637 = vmatprep.subr.mxu0 0.0
        %638 = vmatpush1.msra.mxu0 0.0
        %639 = vmatprep.subr.mxu0 0.0
        %640 = vmatpush1.msra.mxu0 0.0
        %641 = vmatprep.subr.mxu0 0.0
        %642 = vmatpush1.msra.mxu0 0.0
        %643 = vmatprep.subr.mxu0 0.0
        %644 = vmatpush1.msra.mxu0 0.0
        %645 = vmatprep.subr.mxu0 0.0
        %646 = vmatpush1.msra.mxu0 0.0
        %647 = vmatprep.subr.mxu0 0.0
        %648 = vmatpush1.msra.mxu0 0.0
        %649 = vmatprep.subr.mxu0 0.0
        %650 = vmatpush1.msra.mxu0 0.0
        %651 = vmatprep.subr.mxu0 0.0
        %652 = vmatpush1.msra.mxu0 0.0
        %653 = vmatprep.subr.mxu0 0.0
        %654 = vmatpush1.msra.mxu0 0.0
        %655 = vmatprep.mubr.f32.mxu0 0.0
        %656 = vmatmul.mubr.f32.gmra.mrb[0].mxu0 %v586
        %v657 = vpop.f32.mrb[0].mxu0
        %v658 = vadd.f32 0.0, %v657
        %v659 = vpop.f32.mrb[0].mxu0
        %660 = vmatprep.mubr.f32.mxu0 0.0
        %661 = vmatmul.mubr.f32.gmra.mrb[0].mxu0 %v589
        %v662 = vpop.f32.mrb[0].mxu0
        %v663 = vadd.f32 0.0, %v662
        %v664 = vpop.f32.mrb[0].mxu0
        %665 = vdwg.mxu0
        %v666 = vld [vmem:[#allocation5] sm:$0xff]
        %v667 = vld [vmem:[#allocation5 + $0x8] sm:$0xff]
        %v669 = vsel %vm584, %v658, 0
        %v672 = vsel %vm584, %v663, 0
        %674 = vmatprep.subr.mxu0 0.0
        %675 = vmatpush1.msra.mxu0 %v666
        %676 = vmatprep.subr.mxu0 0.0
        %677 = vmatpush1.msra.mxu0 %v667
        %678 = vmatprep.subr.mxu0 0.0
        %679 = vmatpush1.msra.mxu0 0.0
        %680 = vmatprep.subr.mxu0 0.0
        %681 = vmatpush1.msra.mxu0 0.0
        %682 = vmatprep.subr.mxu0 0.0
        %683 = vmatpush1.msra.mxu0 0.0
        %684 = vmatprep.subr.mxu0 0.0
        %685 = vmatpush1.msra.mxu0 0.0
        %686 = vmatprep.subr.mxu0 0.0
        %687 = vmatpush1.msra.mxu0 0.0
        %688 = vmatprep.subr.mxu0 0.0
        %689 = vmatpush1.msra.mxu0 0.0
        %690 = vmatprep.subr.mxu0 0.0
        %691 = vmatpush1.msra.mxu0 0.0
        %692 = vmatprep.subr.mxu0 0.0
        %693 = vmatpush1.msra.mxu0 0.0
        %694 = vmatprep.subr.mxu0 0.0
        %695 = vmatpush1.msra.mxu0 0.0
        %696 = vmatprep.subr.mxu0 0.0
        %697 = vmatpush1.msra.mxu0 0.0
        %698 = vmatprep.subr.mxu0 0.0
        %699 = vmatpush1.msra.mxu0 0.0
        %700 = vmatprep.subr.mxu0 0.0
        %701 = vmatpush1.msra.mxu0 0.0
        %702 = vmatprep.subr.mxu0 0.0
        %703 = vmatpush1.msra.mxu0 0.0
        %704 = vmatprep.subr.mxu0 0.0
        %705 = vmatpush1.msra.mxu0 0.0
        %706 = vmatprep.subr.mxu0 0.0
        %707 = vmatpush1.msra.mxu0 0.0
        %708 = vmatprep.subr.mxu0 0.0
        %709 = vmatpush1.msra.mxu0 0.0
        %710 = vmatprep.subr.mxu0 0.0
        %711 = vmatpush1.msra.mxu0 0.0
        %712 = vmatprep.subr.mxu0 0.0
        %713 = vmatpush1.msra.mxu0 0.0
        %714 = vmatprep.subr.mxu0 0.0
        %715 = vmatpush1.msra.mxu0 0.0
        %716 = vmatprep.subr.mxu0 0.0
        %717 = vmatpush1.msra.mxu0 0.0
        %718 = vmatprep.subr.mxu0 0.0
        %719 = vmatpush1.msra.mxu0 0.0
        %720 = vmatprep.subr.mxu0 0.0
        %721 = vmatpush1.msra.mxu0 0.0
        %722 = vmatprep.subr.mxu0 0.0
        %723 = vmatpush1.msra.mxu0 0.0
        %724 = vmatprep.subr.mxu0 0.0
        %725 = vmatpush1.msra.mxu0 0.0
        %726 = vmatprep.subr.mxu0 0.0
        %727 = vmatpush1.msra.mxu0 0.0
        %728 = vmatprep.subr.mxu0 0.0
        %729 = vmatpush1.msra.mxu0 0.0
        %730 = vmatprep.subr.mxu0 0.0
        %731 = vmatpush1.msra.mxu0 0.0
        %732 = vmatprep.subr.mxu0 0.0
        %733 = vmatpush1.msra.mxu0 0.0
        %734 = vmatprep.subr.mxu0 0.0
        %735 = vmatpush1.msra.mxu0 0.0
        %736 = vmatprep.subr.mxu0 0.0
        %737 = vmatpush1.msra.mxu0 0.0
        %738 = vmatprep.mubr.f32.mxu0 0.0
        %739 = vmatmul.mubr.f32.gmra.mrb[0].mxu0 %v669
        %v740 = vpop.f32.mrb[0].mxu0
        %v741 = vadd.f32 0.0, %v740
        %v742 = vpop.f32.mrb[0].mxu0
        %743 = vmatprep.mubr.f32.mxu0 0.0
        %744 = vmatmul.mubr.f32.gmra.mrb[0].mxu0 %v672
        %v745 = vpop.f32.mrb[0].mxu0
        %v746 = vadd.f32 0.0, %v745
        %v747 = vpop.f32.mrb[0].mxu0
        %748 = vdwg.mxu0
        %v749 = vsub.f32 %v741, %v573
        %v750 = vsub.f32 %v746, %v574
        %v751 = vmul.f32 %v749, %v749
        %v752 = vmul.f32 %v750, %v750
        %v753 = vmul.f32 %v751, %v577
        %v754 = vmul.f32 %v752, %v578
        %v755 = vsel %vm584, %v753, 0.0
        %v756 = vsel %vm584, %v754, 0.0
        %v757 = vadd.f32 %v755, %v756
        %758 = vadd.xlane.f32.xlu0 %v757
        %v759 = vpop.xlane.xlu0 %758
        %v760 = vrot.slane %v759, 4
        %v761 = vadd.f32 %v759, %v760
        %v762 = vrot.slane %v761, 2
        %v763 = vadd.f32 %v761, %v762
        %v764 = vrot.slane %v763, 1
        %v765 = vadd.f32 %v763, %v764
        %s766 = vtos %v765
        %v767 = vstv %s766
        %v768 = vadd.f32 %v579, %v767
        %vm769 = vcmask 0
        %770 = vst.msk [vmem:[#allocation12] sm:$0x1] %vm769, %v768
        %v771 = vld [vmem:[#allocation13] sm:$0x1]
        %v772 = vld [vmem:[%s492] sm:$0xff]
        %v773 = vld [vmem:[%s2] sm:$0xff]
        %v774 = vld [vmem:[%s2 + $0x8] sm:$0xff]
        %vm775 = vcmask 64512
        %v777 = vsel %vm775, %v773, 0
        %v780 = vsel %vm775, %v774, 0
        %782 = vmatprep.subr.mxu0 0.0
        %783 = vmatpush1.msra.mxu0 %v772
        %784 = vmatprep.subr.mxu0 0.0
        %785 = vmatpush1.msra.mxu0 0.0
        %786 = vmatprep.subr.mxu0 0.0
        %787 = vmatpush1.msra.mxu0 0.0
        %788 = vmatprep.subr.mxu0 0.0
        %789 = vmatpush1.msra.mxu0 0.0
        %790 = vmatprep.subr.mxu0 0.0
        %791 = vmatpush1.msra.mxu0 0.0
        %792 = vmatprep.subr.mxu0 0.0
        %793 = vmatpush1.msra.mxu0 0.0
        %794 = vmatprep.subr.mxu0 0.0
        %795 = vmatpush1.msra.mxu0 0.0
        %796 = vmatprep.subr.mxu0 0.0
        %797 = vmatpush1.msra.mxu0 0.0
        %798 = vmatprep.subr.mxu0 0.0
        %799 = vmatpush1.msra.mxu0 0.0
        %800 = vmatprep.subr.mxu0 0.0
        %801 = vmatpush1.msra.mxu0 0.0
        %802 = vmatprep.subr.mxu0 0.0
        %803 = vmatpush1.msra.mxu0 0.0
        %804 = vmatprep.subr.mxu0 0.0
        %805 = vmatpush1.msra.mxu0 0.0
        %806 = vmatprep.subr.mxu0 0.0
        %807 = vmatpush1.msra.mxu0 0.0
        %808 = vmatprep.subr.mxu0 0.0
        %809 = vmatpush1.msra.mxu0 0.0
        %810 = vmatprep.subr.mxu0 0.0
        %811 = vmatpush1.msra.mxu0 0.0
        %812 = vmatprep.subr.mxu0 0.0
        %813 = vmatpush1.msra.mxu0 0.0
        %814 = vmatprep.subr.mxu0 0.0
        %815 = vmatpush1.msra.mxu0 0.0
        %816 = vmatprep.subr.mxu0 0.0
        %817 = vmatpush1.msra.mxu0 0.0
        %818 = vmatprep.subr.mxu0 0.0
        %819 = vmatpush1.msra.mxu0 0.0
        %820 = vmatprep.subr.mxu0 0.0
        %821 = vmatpush1.msra.mxu0 0.0
        %822 = vmatprep.subr.mxu0 0.0
        %823 = vmatpush1.msra.mxu0 0.0
        %824 = vmatprep.subr.mxu0 0.0
        %825 = vmatpush1.msra.mxu0 0.0
        %826 = vmatprep.subr.mxu0 0.0
        %827 = vmatpush1.msra.mxu0 0.0
        %828 = vmatprep.subr.mxu0 0.0
        %829 = vmatpush1.msra.mxu0 0.0
        %830 = vmatprep.subr.mxu0 0.0
        %831 = vmatpush1.msra.mxu0 0.0
        %832 = vmatprep.subr.mxu0 0.0
        %833 = vmatpush1.msra.mxu0 0.0
        %834 = vmatprep.subr.mxu0 0.0
        %835 = vmatpush1.msra.mxu0 0.0
        %836 = vmatprep.subr.mxu0 0.0
        %837 = vmatpush1.msra.mxu0 0.0
        %838 = vmatprep.subr.mxu0 0.0
        %839 = vmatpush1.msra.mxu0 0.0
        %840 = vmatprep.subr.mxu0 0.0
        %841 = vmatpush1.msra.mxu0 0.0
        %842 = vmatprep.subr.mxu0 0.0
        %843 = vmatpush1.msra.mxu0 0.0
        %844 = vmatprep.subr.mxu0 0.0
        %845 = vmatpush1.msra.mxu0 0.0
        %846 = vmatprep.mubr.f32.mxu0 0.0
        %847 = vmatmul.mubr.f32.gmra.mrb[0].mxu0 %v777
        %v848 = vpop.f32.mrb[0].mxu0
        %v849 = vadd.f32 0.0, %v848
        %v850 = vpop.f32.mrb[0].mxu0
        %851 = vmatprep.mubr.f32.mxu0 0.0
        %852 = vmatmul.mubr.f32.gmra.mrb[0].mxu0 %v780
        %v853 = vpop.f32.mrb[0].mxu0
        %v854 = vadd.f32 0.0, %v853
        %v855 = vpop.f32.mrb[0].mxu0
        %856 = vdwg.mxu0
        %v857 = vld [vmem:[#allocation7] sm:$0xff]
        %v859 = vsel %vm775, %v849, 0
        %v862 = vsel %vm775, %v854, 0
        %864 = vmatprep.subr.mxu0 0.0
        %865 = vmatpush1.msra.mxu0 %v857
        %866 = vmatprep.subr.mxu0 0.0
        %867 = vmatpush1.msra.mxu0 0.0
        %868 = vmatprep.subr.mxu0 0.0
        %869 = vmatpush1.msra.mxu0 0.0
        %870 = vmatprep.subr.mxu0 0.0
        %871 = vmatpush1.msra.mxu0 0.0
        %872 = vmatprep.subr.mxu0 0.0
        %873 = vmatpush1.msra.mxu0 0.0
        %874 = vmatprep.subr.mxu0 0.0
        %875 = vmatpush1.msra.mxu0 0.0
        %876 = vmatprep.subr.mxu0 0.0
        %877 = vmatpush1.msra.mxu0 0.0
        %878 = vmatprep.subr.mxu0 0.0
        %879 = vmatpush1.msra.mxu0 0.0
        %880 = vmatprep.subr.mxu0 0.0
        %881 = vmatpush1.msra.mxu0 0.0
        %882 = vmatprep.subr.mxu0 0.0
        %883 = vmatpush1.msra.mxu0 0.0
        %884 = vmatprep.subr.mxu0 0.0
        %885 = vmatpush1.msra.mxu0 0.0
        %886 = vmatprep.subr.mxu0 0.0
        %887 = vmatpush1.msra.mxu0 0.0
        %888 = vmatprep.subr.mxu0 0.0
        %889 = vmatpush1.msra.mxu0 0.0
        %890 = vmatprep.subr.mxu0 0.0
        %891 = vmatpush1.msra.mxu0 0.0
        %892 = vmatprep.subr.mxu0 0.0
        %893 = vmatpush1.msra.mxu0 0.0
        %894 = vmatprep.subr.mxu0 0.0
        %895 = vmatpush1.msra.mxu0 0.0
        %896 = vmatprep.subr.mxu0 0.0
        %897 = vmatpush1.msra.mxu0 0.0
        %898 = vmatprep.subr.mxu0 0.0
        %899 = vmatpush1.msra.mxu0 0.0
        %900 = vmatprep.subr.mxu0 0.0
        %901 = vmatpush1.msra.mxu0 0.0
        %902 = vmatprep.subr.mxu0 0.0
        %903 = vmatpush1.msra.mxu0 0.0
        %904 = vmatprep.subr.mxu0 0.0
        %905 = vmatpush1.msra.mxu0 0.0
        %906 = vmatprep.subr.mxu0 0.0
        %907 = vmatpush1.msra.mxu0 0.0
        %908 = vmatprep.subr.mxu0 0.0
        %909 = vmatpush1.msra.mxu0 0.0
        %910 = vmatprep.subr.mxu0 0.0
        %911 = vmatpush1.msra.mxu0 0.0
        %912 = vmatprep.subr.mxu0 0.0
        %913 = vmatpush1.msra.mxu0 0.0
        %914 = vmatprep.subr.mxu0 0.0
        %915 = vmatpush1.msra.mxu0 0.0
        %916 = vmatprep.subr.mxu0 0.0
        %917 = vmatpush1.msra.mxu0 0.0
        %918 = vmatprep.subr.mxu0 0.0
        %919 = vmatpush1.msra.mxu0 0.0
        %920 = vmatprep.subr.mxu0 0.0
        %921 = vmatpush1.msra.mxu0 0.0
        %922 = vmatprep.subr.mxu0 0.0
        %923 = vmatpush1.msra.mxu0 0.0
        %924 = vmatprep.subr.mxu0 0.0
        %925 = vmatpush1.msra.mxu0 0.0
        %926 = vmatprep.subr.mxu0 0.0
        %927 = vmatpush1.msra.mxu0 0.0
        %928 = vmatprep.mubr.f32.mxu0 0.0
        %929 = vmatmul.mubr.f32.gmra.mrb[0].mxu0 %v859
        %v930 = vpop.f32.mrb[0].mxu0
        %v931 = vadd.f32 0.0, %v930
        %v932 = vpop.f32.mrb[0].mxu0
        %933 = vmatprep.mubr.f32.mxu0 0.0
        %934 = vmatmul.mubr.f32.gmra.mrb[0].mxu0 %v862
        %v935 = vpop.f32.mrb[0].mxu0
        %v936 = vadd.f32 0.0, %v935
        %v937 = vpop.f32.mrb[0].mxu0
        %938 = vdwg.mxu0
        %v939 = vsub.f32 %v931, %v573
        %v940 = vsub.f32 %v936, %v574
        %v941 = vmul.f32 %v939, %v939
        %v942 = vmul.f32 %v940, %v940
        %v943 = vmul.f32 %v941, %v577
        %v944 = vmul.f32 %v942, %v578
        %v945 = vsel %vm584, %v943, 0.0
        %v946 = vsel %vm584, %v944, 0.0
        %v947 = vadd.f32 %v945, %v946
        %948 = vadd.xlane.f32.xlu0 %v947
        %v949 = vpop.xlane.xlu0 %948
        %v950 = vrot.slane %v949, 4
        %v951 = vadd.f32 %v949, %v950
        %v952 = vrot.slane %v951, 2
        %v953 = vadd.f32 %v951, %v952
        %v954 = vrot.slane %v953, 1
        %v955 = vadd.f32 %v953, %v954
        %s956 = vtos %v955
        %v957 = vstv %s956
        %v958 = vadd.f32 %v771, %v957
        %959 = vst.msk [vmem:[#allocation13] sm:$0x1] %vm769, %v958
        %v960 = vld [vmem:[#allocation15] sm:$0x1]
        %v961 = vld [vmem:[%s501] sm:$0xff]
        %v962 = vld [vmem:[%s4] sm:$0xff]
        %v963 = vld [vmem:[%s4 + $0x8] sm:$0xff]
        %v965 = vsel %vm775, %v962, 0
        %v968 = vsel %vm775, %v963, 0
        %970 = vmatprep.subr.mxu0 0.0
        %971 = vmatpush1.msra.mxu0 %v961
        %972 = vmatprep.subr.mxu0 0.0
        %973 = vmatpush1.msra.mxu0 0.0
        %974 = vmatprep.subr.mxu0 0.0
        %975 = vmatpush1.msra.mxu0 0.0
        %976 = vmatprep.subr.mxu0 0.0
        %977 = vmatpush1.msra.mxu0 0.0
        %978 = vmatprep.subr.mxu0 0.0
        %979 = vmatpush1.msra.mxu0 0.0
        %980 = vmatprep.subr.mxu0 0.0
        %981 = vmatpush1.msra.mxu0 0.0
        %982 = vmatprep.subr.mxu0 0.0
        %983 = vmatpush1.msra.mxu0 0.0
        %984 = vmatprep.subr.mxu0 0.0
        %985 = vmatpush1.msra.mxu0 0.0
        %986 = vmatprep.subr.mxu0 0.0
        %987 = vmatpush1.msra.mxu0 0.0
        %988 = vmatprep.subr.mxu0 0.0
        %989 = vmatpush1.msra.mxu0 0.0
        %990 = vmatprep.subr.mxu0 0.0
        %991 = vmatpush1.msra.mxu0 0.0
        %992 = vmatprep.subr.mxu0 0.0
        %993 = vmatpush1.msra.mxu0 0.0
        %994 = vmatprep.subr.mxu0 0.0
        %995 = vmatpush1.msra.mxu0 0.0
        %996 = vmatprep.subr.mxu0 0.0
        %997 = vmatpush1.msra.mxu0 0.0
        %998 = vmatprep.subr.mxu0 0.0
        %999 = vmatpush1.msra.mxu0 0.0
        %1000 = vmatprep.subr.mxu0 0.0
        %1001 = vmatpush1.msra.mxu0 0.0
        %1002 = vmatprep.subr.mxu0 0.0
        %1003 = vmatpush1.msra.mxu0 0.0
        %1004 = vmatprep.subr.mxu0 0.0
        %1005 = vmatpush1.msra.mxu0 0.0
        %1006 = vmatprep.subr.mxu0 0.0
        %1007 = vmatpush1.msra.mxu0 0.0
        %1008 = vmatprep.subr.mxu0 0.0
        %1009 = vmatpush1.msra.mxu0 0.0
        %1010 = vmatprep.subr.mxu0 0.0
        %1011 = vmatpush1.msra.mxu0 0.0
        %1012 = vmatprep.subr.mxu0 0.0
        %1013 = vmatpush1.msra.mxu0 0.0
        %1014 = vmatprep.subr.mxu0 0.0
        %1015 = vmatpush1.msra.mxu0 0.0
        %1016 = vmatprep.subr.mxu0 0.0
        %1017 = vmatpush1.msra.mxu0 0.0
        %1018 = vmatprep.subr.mxu0 0.0
        %1019 = vmatpush1.msra.mxu0 0.0
        %1020 = vmatprep.subr.mxu0 0.0
        %1021 = vmatpush1.msra.mxu0 0.0
        %1022 = vmatprep.subr.mxu0 0.0
        %1023 = vmatpush1.msra.mxu0 0.0
        %1024 = vmatprep.subr.mxu0 0.0
        %1025 = vmatpush1.msra.mxu0 0.0
        %1026 = vmatprep.subr.mxu0 0.0
        %1027 = vmatpush1.msra.mxu0 0.0
        %1028 = vmatprep.subr.mxu0 0.0
        %1029 = vmatpush1.msra.mxu0 0.0
        %1030 = vmatprep.subr.mxu0 0.0
        %1031 = vmatpush1.msra.mxu0 0.0
        %1032 = vmatprep.subr.mxu0 0.0
        %1033 = vmatpush1.msra.mxu0 0.0
        %1034 = vmatprep.mubr.f32.mxu0 0.0
        %1035 = vmatmul.mubr.f32.gmra.mrb[0].mxu0 %v965
        %v1036 = vpop.f32.mrb[0].mxu0
        %v1037 = vadd.f32 0.0, %v1036
        %v1038 = vpop.f32.mrb[0].mxu0
        %1039 = vmatprep.mubr.f32.mxu0 0.0
        %1040 = vmatmul.mubr.f32.gmra.mrb[0].mxu0 %v968
        %v1041 = vpop.f32.mrb[0].mxu0
        %v1042 = vadd.f32 0.0, %v1041
        %v1043 = vpop.f32.mrb[0].mxu0
        %1044 = vdwg.mxu0
        %v1045 = vld [vmem:[#allocation8] sm:$0xff]
        %v1047 = vsel %vm775, %v1037, 0
        %v1050 = vsel %vm775, %v1042, 0
        %1052 = vmatprep.subr.mxu0 0.0
        %1053 = vmatpush1.msra.mxu0 %v1045
        %1054 = vmatprep.subr.mxu0 0.0
        %1055 = vmatpush1.msra.mxu0 0.0
        %1056 = vmatprep.subr.mxu0 0.0
        %1057 = vmatpush1.msra.mxu0 0.0
        %1058 = vmatprep.subr.mxu0 0.0
        %1059 = vmatpush1.msra.mxu0 0.0
        %1060 = vmatprep.subr.mxu0 0.0
        %1061 = vmatpush1.msra.mxu0 0.0
        %1062 = vmatprep.subr.mxu0 0.0
        %1063 = vmatpush1.msra.mxu0 0.0
        %1064 = vmatprep.subr.mxu0 0.0
        %1065 = vmatpush1.msra.mxu0 0.0
        %1066 = vmatprep.subr.mxu0 0.0
        %1067 = vmatpush1.msra.mxu0 0.0
        %1068 = vmatprep.subr.mxu0 0.0
        %1069 = vmatpush1.msra.mxu0 0.0
        %1070 = vmatprep.subr.mxu0 0.0
        %1071 = vmatpush1.msra.mxu0 0.0
        %1072 = vmatprep.subr.mxu0 0.0
        %1073 = vmatpush1.msra.mxu0 0.0
        %1074 = vmatprep.subr.mxu0 0.0
        %1075 = vmatpush1.msra.mxu0 0.0
        %1076 = vmatprep.subr.mxu0 0.0
        %1077 = vmatpush1.msra.mxu0 0.0
        %1078 = vmatprep.subr.mxu0 0.0
        %1079 = vmatpush1.msra.mxu0 0.0
        %1080 = vmatprep.subr.mxu0 0.0
        %1081 = vmatpush1.msra.mxu0 0.0
        %1082 = vmatprep.subr.mxu0 0.0
        %1083 = vmatpush1.msra.mxu0 0.0
        %1084 = vmatprep.subr.mxu0 0.0
        %1085 = vmatpush1.msra.mxu0 0.0
        %1086 = vmatprep.subr.mxu0 0.0
        %1087 = vmatpush1.msra.mxu0 0.0
        %1088 = vmatprep.subr.mxu0 0.0
        %1089 = vmatpush1.msra.mxu0 0.0
        %1090 = vmatprep.subr.mxu0 0.0
        %1091 = vmatpush1.msra.mxu0 0.0
        %1092 = vmatprep.subr.mxu0 0.0
        %1093 = vmatpush1.msra.mxu0 0.0
        %1094 = vmatprep.subr.mxu0 0.0
        %1095 = vmatpush1.msra.mxu0 0.0
        %1096 = vmatprep.subr.mxu0 0.0
        %1097 = vmatpush1.msra.mxu0 0.0
        %1098 = vmatprep.subr.mxu0 0.0
        %1099 = vmatpush1.msra.mxu0 0.0
        %1100 = vmatprep.subr.mxu0 0.0
        %1101 = vmatpush1.msra.mxu0 0.0
        %1102 = vmatprep.subr.mxu0 0.0
        %1103 = vmatpush1.msra.mxu0 0.0
        %1104 = vmatprep.subr.mxu0 0.0
        %1105 = vmatpush1.msra.mxu0 0.0
        %1106 = vmatprep.subr.mxu0 0.0
        %1107 = vmatpush1.msra.mxu0 0.0
        %1108 = vmatprep.subr.mxu0 0.0
        %1109 = vmatpush1.msra.mxu0 0.0
        %1110 = vmatprep.subr.mxu0 0.0
        %1111 = vmatpush1.msra.mxu0 0.0
        %1112 = vmatprep.subr.mxu0 0.0
        %1113 = vmatpush1.msra.mxu0 0.0
        %1114 = vmatprep.subr.mxu0 0.0
        %1115 = vmatpush1.msra.mxu0 0.0
        %1116 = vmatprep.mubr.f32.mxu0 0.0
        %1117 = vmatmul.mubr.f32.gmra.mrb[0].mxu0 %v1047
        %v1118 = vpop.f32.mrb[0].mxu0
        %v1119 = vadd.f32 0.0, %v1118
        %v1120 = vpop.f32.mrb[0].mxu0
        %1121 = vmatprep.mubr.f32.mxu0 0.0
        %1122 = vmatmul.mubr.f32.gmra.mrb[0].mxu0 %v1050
        %v1123 = vpop.f32.mrb[0].mxu0
        %v1124 = vadd.f32 0.0, %v1123
        %v1125 = vpop.f32.mrb[0].mxu0
        %1126 = vdwg.mxu0
        %v1127 = vsub.f32 %v1119, %v573
        %v1128 = vsub.f32 %v1124, %v574
        %v1129 = vmul.f32 %v1127, %v1127
        %v1130 = vmul.f32 %v1128, %v1128
        %v1131 = vmul.f32 %v1129, %v577
        %v1132 = vmul.f32 %v1130, %v578
        %v1133 = vsel %vm584, %v1131, 0.0
        %v1134 = vsel %vm584, %v1132, 0.0
        %v1135 = vadd.f32 %v1133, %v1134
        %1136 = vadd.xlane.f32.xlu0 %v1135
        %v1137 = vpop.xlane.xlu0 %1136
        %v1138 = vrot.slane %v1137, 4
        %v1139 = vadd.f32 %v1137, %v1138
        %v1140 = vrot.slane %v1139, 2
        %v1141 = vadd.f32 %v1139, %v1140
        %v1142 = vrot.slane %v1141, 1
        %v1143 = vadd.f32 %v1141, %v1142
        %s1144 = vtos %v1143
        %v1145 = vstv %s1144
        %v1146 = vadd.f32 %v960, %v1145
        %1147 = vst.msk [vmem:[#allocation15] sm:$0x1] %vm769, %v1146
        %v1148 = vld [vmem:[#allocation16] sm:$0x1]
        %vm1149 = vcmp.gt.f32.partialorder %v577, 0.0
        %vm1150 = vcmp.gt.f32.partialorder %v578, 0.0
        %v1151 = vsel %vm1149, 1, 0
        %v1152 = vsel %vm1150, 1, 0
        %v1153 = vcvt.s32.f32 %v1151
        %v1154 = vcvt.s32.f32 %v1152
        %v1155 = vsel %vm584, %v1153, 0.0
        %v1156 = vsel %vm584, %v1154, 0.0
        %v1157 = vadd.f32 %v1155, %v1156
        %1158 = vadd.xlane.f32.xlu0 %v1157
        %v1159 = vpop.xlane.xlu0 %1158
        %v1160 = vrot.slane %v1159, 4
        %v1161 = vadd.f32 %v1159, %v1160
        %v1162 = vrot.slane %v1161, 2
        %v1163 = vadd.f32 %v1161, %v1162
        %v1164 = vrot.slane %v1163, 1
        %v1165 = vadd.f32 %v1163, %v1164
        %s1166 = vtos %v1165
        %v1167 = vstv %s1166
        %v1168 = vadd.f32 %v1148, %v1167
        %1169 = vst.msk [vmem:[#allocation16] sm:$0x1] %vm769, %v1168
        // Predicated region
        $region89: #{tpu_custom_call.1} parent=59 // pred_check
          %p1170 = pneg %p274
        $region90: #{tpu_custom_call.1} parent=59 // pred_check_branch
          %1172 = sbr.rel (%p1170) target = $region92
        $region91: #{tpu_custom_call.1} parent=59 // pred_region
          %s1174 = ssub.s32 16, 16
          %1175 = vsyncadd [#allocation4], %s1174
          %s1177 = sshll.u32 [#allocation12], 4
          %s1178 = int_to_ptr.vmem [resolvable:$true] %s1177
          %1180 = dma.vmem_to_hbm [thread:$0]  %s1178, 16, %s10, [#allocation4]
        $region92: #{tpu_custom_call.1} parent=59 // pred_fallthru
          _
        // Predicated region
        $region93: #{tpu_custom_call.1} parent=59 // pred_check
          %p1181 = pneg %p295
        $region94: #{tpu_custom_call.1} parent=59 // pred_check_branch
          %1183 = sbr.rel (%p1181) target = $region96
        $region95: #{tpu_custom_call.1} parent=59 // pred_region
          %s1185 = ssub.s32 16, 16
          %1186 = vsyncadd [#allocation14], %s1185
          %s1188 = sshll.u32 [#allocation13], 4
          %s1189 = int_to_ptr.vmem [resolvable:$true] %s1188
          %1191 = dma.vmem_to_hbm [thread:$0]  %s1189, 16, %s11, [#allocation14]
        $region96: #{tpu_custom_call.1} parent=59 // pred_fallthru
          _
        // Predicated region
        $region97: #{tpu_custom_call.1} parent=59 // pred_check
          %p1192 = pneg %p316
        $region98: #{tpu_custom_call.1} parent=59 // pred_check_branch
          %1194 = sbr.rel (%p1192) target = $region100
        $region99: #{tpu_custom_call.1} parent=59 // pred_region
          %s1196 = ssub.s32 16, 16
          %1197 = vsyncadd [#allocation14], %s1196
          %s1199 = sshll.u32 [#allocation15], 4
          %s1200 = int_to_ptr.vmem [resolvable:$true] %s1199
          %1202 = dma.vmem_to_hbm [thread:$0]  %s1200, 16, %s12, [#allocation14]
        $region100: #{tpu_custom_call.1} parent=59 // pred_fallthru
          _
        // Predicated region
        $region101: #{tpu_custom_call.1} parent=59 // pred_check
          %p1203 = pneg %p337
        $region102: #{tpu_custom_call.1} parent=59 // pred_check_branch
          %1205 = sbr.rel (%p1203) target = $region104
        $region103: #{tpu_custom_call.1} parent=59 // pred_region
          %s1207 = ssub.s32 16, 16
          %1208 = vsyncadd [#allocation17], %s1207
          %s1210 = sshll.u32 [#allocation16], 4
          %s1211 = int_to_ptr.vmem [resolvable:$true] %s1210
          %1213 = dma.vmem_to_hbm [thread:$0]  %s1211, 16, %s13, [#allocation17]
        $region104: #{tpu_custom_call.1} parent=59 // pred_fallthru
          _
        // Predicated region
        $region105: #{tpu_custom_call.1} parent=59 // pred_check
          %p1214 = pneg %p274
        $region106: #{tpu_custom_call.1} parent=59 // pred_check_branch
          %1216 = sbr.rel (%p1214) target = $region108
        $region107: #{tpu_custom_call.1} parent=59 // pred_region
          %1217 = dma.done [#allocation4], 16
        $region108: #{tpu_custom_call.1} parent=59 // pred_fallthru
          _
        // Predicated region
        $region109: #{tpu_custom_call.1} parent=59 // pred_check
          %p1218 = pneg %p295
        $region110: #{tpu_custom_call.1} parent=59 // pred_check_branch
          %1220 = sbr.rel (%p1218) target = $region112
        $region111: #{tpu_custom_call.1} parent=59 // pred_region
          %1221 = dma.done [#allocation14], 16
        $region112: #{tpu_custom_call.1} parent=59 // pred_fallthru
          _
        // Predicated region
        $region113: #{tpu_custom_call.1} parent=59 // pred_check
          %p1222 = pneg %p316
        $region114: #{tpu_custom_call.1} parent=59 // pred_check_branch
          %1224 = sbr.rel (%p1222) target = $region116
        $region115: #{tpu_custom_call.1} parent=59 // pred_region
          %1225 = dma.done [#allocation14], 16
        $region116: #{tpu_custom_call.1} parent=59 // pred_fallthru
          _
        // Predicated region
        $region117: #{tpu_custom_call.1} parent=59 // pred_check
          %p1226 = pneg %p337
        $region118: #{tpu_custom_call.1} parent=59 // pred_check_branch
          %1228 = sbr.rel (%p1226) target = $region120
        $region119: #{tpu_custom_call.1} parent=59 // pred_region
          %1229 = dma.done [#allocation17], 16
        $region120: #{tpu_custom_call.1} parent=59 // pred_fallthru
          _
      $region60: #{tpu_custom_call.1} parent=5 // pred_fallthru
        _
      %p1230 = scmp.le.s32.totalorder 2, %s26
      // Predicated region
      $region121: #{tpu_custom_call.1} parent=5 // pred_check
        %p1231 = pneg %p1230
      $region122: #{tpu_custom_call.1} parent=5 // pred_check_branch
        %1233 = sbr.rel (%p1231) target = $region124
      $region123: #{tpu_custom_call.1} parent=5 // pred_region
        %s1234 = ssub.s32 %s26, 2
      $region124: #{tpu_custom_call.1} parent=5 // pred_fallthru
        _
    $region6: #{tpu_custom_call.1} parent=1 // loop_footer
      %s30 = sadd.s32 1, %s26
    $region7: #{tpu_custom_call.1} parent=1 // loop_footer_branch
      %25 = sbr.rel target = $region3
    $region8: #{tpu_custom_call.1} parent=1 // loop_exit
      _
    %1235 = vsyncpa [#allocation3], 1
    %s1236 = scalar_lea.sflag [#allocation3], 1
    %1237 = vsyncpa %s1236, 1
    %1238 = vsyncpa [#allocation6], 1
    %1239 = vsyncpa [#allocation9], 1
    %1240 = vsyncpa [#allocation4], 1
    %s1241 = scalar_lea.sflag [#allocation4], 1
    %1242 = vsyncpa %s1241, 1
    %1243 = vsyncpa [#allocation14], 1
    %1244 = vsyncpa [#allocation17], 1

</llo_original>
